<compile_context>
chip_gen: v6e
topology: v6e:2x2x1
jax: 0.10.0
libtpu: 0.0.40
codegen_flags: <defaults>
</compile_context>

<pallas_src>
import numpy as np
import jax
import jax.numpy as jnp
from jax import lax
from jax.experimental import pallas as pl
from jax.experimental.pallas import tpu as pltpu

IMG_SHAPE = (16, 16)        # (H, W); torch forward adds the channel dim (C=1)
ACTIONS = (0, 1, 2, 3)      # output_actions -> len() = output features
BATCH = 2

IN_FEATS = 1 * IMG_SHAPE[0] * IMG_SHAPE[1]   # 256 (already a lane multiple)
P1_PAD = 384                                 # pooled1 feats 294 -> 384
P2_PAD = 128                                 # pooled2 feats  18 -> 128 (fc_feats)
H1_PAD = 128                                 # fc1 out 16 -> 128
H2_PAD = 128                                 # fc2 out  8 -> 128
OUT_PAD = 128                                # actions 4 -> 128


# -----------------------------------------------------------------------------
# Deterministic parameter init (same shapes as BasicDQN.__init__)
# -----------------------------------------------------------------------------
def init_params(key):
    def uniform(k, shape, fan_in):
        bound = 1.0 / np.sqrt(fan_in)
        return jax.random.uniform(k, shape, jnp.float32, -bound, bound)

    ks = jax.random.split(key, 10)
    p = {}
    p["conv1_w"] = uniform(ks[0], (6, 1, 3, 3), 1 * 3 * 3)
    p["conv1_b"] = uniform(ks[1], (6,), 1 * 3 * 3)
    p["conv2_w"] = uniform(ks[2], (2, 6, 2, 2), 6 * 2 * 2)
    p["conv2_b"] = uniform(ks[3], (2,), 6 * 2 * 2)
    p["fc1_w"] = uniform(ks[4], (16, 18), 18)          # torch Linear: (out, in)
    p["fc1_b"] = uniform(ks[5], (16,), 18)
    p["fc2_w"] = uniform(ks[6], (8, 16), 16)
    p["fc2_b"] = uniform(ks[7], (8,), 16)
    p["out_w"] = uniform(ks[8], (len(ACTIONS), 8), 8)
    p["out_b"] = uniform(ks[9], (len(ACTIONS),), 8)
    return p


# -----------------------------------------------------------------------------
# Host-side algebra: fuse conv(VALID, stride 1) with the 2x2/stride-2 max-pool.
# Returns the 4 pool-corner Toeplitz matrices, the pooled bias, and the shape.
#   maxpool(relu(conv(x)+b)) == relu(max_corner(x @ M_corner) + b_pooled)
# -----------------------------------------------------------------------------
def fused_conv_pool_mats(w, b, in_shape):
    w = np.asarray(w, np.float32)
    b = np.asarray(b, np.float32)
    cout, cin, kh, kw = w.shape
    _, hi, wi = in_shape
    hc, wc = hi - kh + 1, wi - kw + 1          # conv output (VALID, stride 1)
    hp, wp = hc // 2, wc // 2                  # MaxPool2d((2,2)), floor mode
    mats = []
    for di in range(2):
        for dj in range(2):
            M = np.zeros((cin * hi * wi, cout * hp * wp), np.float32)
            for co in range(cout):
                for oh in range(hp):
                    for ow_ in range(wp):
                        oidx = co * hp * wp + oh * wp + ow_
                        ch, cw = 2 * oh + di, 2 * ow_ + dj     # conv-out pixel
                        for ci in range(cin):
                            for ki in range(kh):
                                for kj in range(kw):
                                    iidx = ci * hi * wi + (ch + ki) * wi + (cw + kj)
                                    M[iidx, oidx] = w[co, ci, ki, kj]
            mats.append(M)
    b_pooled = np.repeat(b, hp * wp).astype(np.float32)
    return mats, b_pooled, (cout, hp, wp)


def pad_to(a, shape):
    out = np.zeros(shape, np.float32)
    out[tuple(slice(0, s) for s in a.shape)] = a
    return out


# -----------------------------------------------------------------------------
# Pallas kernel: whole forward pass. bf16 MXU operands, f32 accumulate/VPU.
# -----------------------------------------------------------------------------
def dqn_kernel(x_ref, w1_ref, w2_ref, fcw_ref, bias_ref, out_ref):
    f32, bf16 = jnp.float32, jnp.bfloat16
    x = x_ref[...].astype(bf16)                  # (BM, 256): f32->bf16 on VPU
    biases = bias_ref[...]                       # (8, 384) f32

    def fused_conv_pool(act, w_ref, n, bias_row):
        # ONE matmul against the 4 corner matrices concatenated along N,
        # then max over the 128-aligned column slices, then bias + ReLU.
        m = jnp.dot(act, w_ref[...], preferred_element_type=f32)   # (BM, 4n)
        c = jnp.maximum(jnp.maximum(m[:, 0:n], m[:, n:2 * n]),
                        jnp.maximum(m[:, 2 * n:3 * n], m[:, 3 * n:4 * n]))
        return jnp.maximum(c + bias_row, 0.0).astype(bf16)

    # conv1 -> relu -> pool1   (flattened (6,7,7)=294, padded to 384 lanes)
    p1 = fused_conv_pool(x, w1_ref, P1_PAD, biases[0:1, :P1_PAD])
    # conv2 -> relu -> pool2   (flattened (2,3,3)=18 == fc_feats, padded to 128)
    p2 = fused_conv_pool(p1, w2_ref, P2_PAD, biases[1:2, :P2_PAD])

    # fc1 -> relu -> fc2 -> relu -> out
    h1 = jnp.maximum(
        jnp.dot(p2, fcw_ref[0], preferred_element_type=f32) + biases[2:3, :H1_PAD],
        0.0).astype(bf16)
    h2 = jnp.maximum(
        jnp.dot(h1, fcw_ref[1], preferred_element_type=f32) + biases[3:4, :H2_PAD],
        0.0).astype(bf16)
    out_ref[...] = (jnp.dot(h2, fcw_ref[2], preferred_element_type=f32)
                    + biases[4:5, :OUT_PAD]).astype(out_ref.dtype)


# -----------------------------------------------------------------------------
# Wrapper
# -----------------------------------------------------------------------------
def build_forward(params):
    in_shape = (1,) + IMG_SHAPE
    m1, b1p, s1 = fused_conv_pool_mats(params["conv1_w"], params["conv1_b"], in_shape)
    m2, b2p, s2 = fused_conv_pool_mats(params["conv2_w"], params["conv2_b"], s1)
    fc_feats = int(np.prod(s2))
    assert fc_feats == 18 and m1[0].shape == (IN_FEATS, 294)

    # Lane-padded bf16 constant slabs (4 operands total, ~1.26 MB):
    #   corner matrices concatenated along the OUTPUT axis -> one dot per layer.
    w1cat = jnp.asarray(
        np.concatenate([pad_to(m, (IN_FEATS, P1_PAD)) for m in m1], axis=1),
        jnp.bfloat16)                                               # (256, 1536)
    w2cat = jnp.asarray(
        np.concatenate([pad_to(m, (P1_PAD, P2_PAD)) for m in m2], axis=1),
        jnp.bfloat16)                                               # (384, 512)
    fcw = jnp.asarray(np.stack([
        pad_to(np.asarray(params["fc1_w"], np.float32).T, (P2_PAD, H1_PAD)),
        pad_to(np.asarray(params["fc2_w"], np.float32).T, (H1_PAD, H2_PAD)),
        pad_to(np.asarray(params["out_w"], np.float32).T, (H2_PAD, OUT_PAD)),
    ]), jnp.bfloat16)                                               # (3, 128, 128)

    bias = np.zeros((8, P1_PAD), np.float32)                        # one f32 slab
    bias[0, :b1p.shape[0]] = b1p
    bias[1, :b2p.shape[0]] = b2p
    bias[2, :16] = np.asarray(params["fc1_b"], np.float32)
    bias[3, :8] = np.asarray(params["fc2_b"], np.float32)
    bias[4, :len(ACTIONS)] = np.asarray(params["out_b"], np.float32)
    bias = jnp.asarray(bias)

    consts = (w1cat, w2cat, fcw, bias)
    n_act = len(ACTIONS)

    def make_call(block_m, num_blocks):
        return pl.pallas_call(
            dqn_kernel,
            out_shape=jax.ShapeDtypeStruct((num_blocks * block_m, OUT_PAD),
                                           jnp.bfloat16),
            grid_spec=pltpu.PrefetchScalarGridSpec(
                num_scalar_prefetch=0,
                grid=(num_blocks,),
                in_specs=[
                    pl.BlockSpec((block_m, IN_FEATS), lambda i: (i, 0)),
                    pl.BlockSpec(w1cat.shape, lambda i: (0, 0)),
                    pl.BlockSpec(w2cat.shape, lambda i: (0, 0)),
                    pl.BlockSpec(fcw.shape, lambda i: (0, 0, 0)),
                    pl.BlockSpec(bias.shape, lambda i: (0, 0)),
                ],
                out_specs=pl.BlockSpec((block_m, OUT_PAD), lambda i: (i, 0)),
            ),
            compiler_params=pltpu.CompilerParams(
                dimension_semantics=("parallel",)),
        )

    def pick_block_m(b):
        # Tiny batch: 16 rows = one fully packed bf16 tile after the in-kernel
        # cast. Large batch: up to 256 rows (fills the 256-wide MXU on v6e/v7x)
        # while keeping num_blocks >= 2 whenever the batch allows it, so both
        # v7x TensorCores receive work via the "parallel" grid axis.
        if b <= 16:
            return 16
        half = -(-b // 2)                          # ceil(b / 2)
        return min(256, ((half + 127) // 128) * 128)

    def forward(x):
        # x: (B, H, W) float32; torch forward does t.unsqueeze(1) -> (B,1,H,W),
        # which flattens to the identical (B, 256) row-major feature vector.
        b = x.shape[0]
        block_m = pick_block_m(b)
        num_blocks = -(-b // block_m)
        pad_b = num_blocks * block_m
        x_flat = x.reshape(b, -1)                  # stays f32; cast in-kernel
        if pad_b != b:
            x_flat = jnp.pad(x_flat, ((0, pad_b - b), (0, 0)))
        y = make_call(block_m, num_blocks)(x_flat, *consts)
        return y[:b, :n_act].astype(jnp.float32)

    return jax.jit(forward)


# Pure-JAX f32 reference (faithful to the torch module) for a sanity check.
def reference_forward(params, x):
    t = x[:, None]                                                   # NCHW, C=1
    t = lax.conv_general_dilated(t, params["conv1_w"], (1, 1), "VALID",
                                 dimension_numbers=("NCHW", "OIHW", "NCHW"))
    t = jnp.maximum(t + params["conv1_b"][None, :, None, None], 0.0)
    t = lax.reduce_window(t, -jnp.inf, lax.max, (1, 1, 2, 2), (1, 1, 2, 2), "VALID")
    t = lax.conv_general_dilated(t, params["conv2_w"], (1, 1), "VALID",
                                 dimension_numbers=("NCHW", "OIHW", "NCHW"))
    t = jnp.maximum(t + params["conv2_b"][None, :, None, None], 0.0)
    t = lax.reduce_window(t, -jnp.inf, lax.max, (1, 1, 2, 2), (1, 1, 2, 2), "VALID")
    t = t.reshape(t.shape[0], -1)
    t = jnp.maximum(t @ params["fc1_w"].T + params["fc1_b"], 0.0)
    t = jnp.maximum(t @ params["fc2_w"].T + params["fc2_b"], 0.0)
    return t @ params["out_w"].T + params["out_b"]


if __name__ == "__main__":
    key = jax.random.PRNGKey(0)
    pkey, xkey = jax.random.split(key)
    params = init_params(pkey)
    x = jax.random.normal(xkey, (BATCH,) + IMG_SHAPE, jnp.float32)

    forward = build_forward(params)
    y = jax.block_until_ready(forward(x))                       # (2, 4) q-values

    y_ref = reference_forward(params, x)
    # bf16 MXU operands / bf16 output slab (f32 accumulate) => loose tolerance.
    np.testing.assert_allclose(np.asarray(y), np.asarray(y_ref),
                               rtol=5e-2, atol=5e-2)
    print("KERNEL_OK")
</pallas_src>

<mosaic_0001>
module attributes {stable_mosaic.version = 11 : i64} {
  func.func @dqn_kernel(%arg0: i32, %arg1: memref<16x256xf32, #tpu.memory_space<vmem>>, %arg2: memref<256x1536xbf16, #tpu.memory_space<vmem>>, %arg3: memref<384x512xbf16, #tpu.memory_space<vmem>>, %arg4: memref<3x128x128xbf16, #tpu.memory_space<vmem>>, %arg5: memref<8x384xf32, #tpu.memory_space<vmem>>, %arg6: memref<16x128xbf16, #tpu.memory_space<vmem>>) attributes {dimension_semantics = [#tpu.dimension_semantics<parallel>], iteration_bounds = array<i64: 1>, scalar_prefetch = 0 : i64, scratch_operands = 0 : i64, tpu.core_type = #tpu.core_type<tc>, window_params = [{transform_indices = @transform_0, window_bounds = array<i64: 16, 256>}, {pipeline_mode = #tpu.pipeline_mode<synchronous>, transform_indices = @transform_1, window_bounds = array<i64: 256, 1536>}, {pipeline_mode = #tpu.pipeline_mode<synchronous>, transform_indices = @transform_2, window_bounds = array<i64: 384, 512>}, {pipeline_mode = #tpu.pipeline_mode<synchronous>, transform_indices = @transform_3, window_bounds = array<i64: 3, 128, 128>}, {pipeline_mode = #tpu.pipeline_mode<synchronous>, transform_indices = @transform_4, window_bounds = array<i64: 8, 384>}, {transform_indices = @transform_5, window_bounds = array<i64: 16, 128>}]} {
    %c0 = arith.constant 0 : index
    %c0_0 = arith.constant 0 : index
    %0 = vector.load %arg1[%c0, %c0_0] : memref<16x256xf32, #tpu.memory_space<vmem>>, vector<16x256xf32>
    %1 = arith.truncf %0 : vector<16x256xf32> to vector<16x256xbf16>
    %c0_1 = arith.constant 0 : index
    %c0_2 = arith.constant 0 : index
    %2 = vector.load %arg5[%c0_1, %c0_2] : memref<8x384xf32, #tpu.memory_space<vmem>>, vector<8x384xf32>
    %3 = vector.extract_strided_slice %2 {offsets = [0, 0], sizes = [1, 384], strides = [1, 1]} : vector<8x384xf32> to vector<1x384xf32>
    %c0_3 = arith.constant 0 : index
    %c0_4 = arith.constant 0 : index
    %4 = vector.load %arg2[%c0_3, %c0_4] : memref<256x1536xbf16, #tpu.memory_space<vmem>>, vector<256x1536xbf16>
    %cst = arith.constant dense<0.000000e+00> : vector<16x1536xf32>
    %5 = tpu.matmul %1, %4, %cst {dimension_numbers = #tpu.dot_dimension_numbers<[1], [0], [0], [1], [0, 0, 1, 1], [], []>} : vector<16x256xbf16>, vector<256x1536xbf16>, vector<16x1536xf32> -> vector<16x1536xf32>
    %6 = vector.extract_strided_slice %5 {offsets = [0, 0], sizes = [16, 384], strides = [1, 1]} : vector<16x1536xf32> to vector<16x384xf32>
    %7 = vector.extract_strided_slice %5 {offsets = [0, 384], sizes = [16, 384], strides = [1, 1]} : vector<16x1536xf32> to vector<16x384xf32>
    %8 = arith.maximumf %6, %7 : vector<16x384xf32>
    %9 = vector.extract_strided_slice %5 {offsets = [0, 768], sizes = [16, 384], strides = [1, 1]} : vector<16x1536xf32> to vector<16x384xf32>
    %10 = vector.extract_strided_slice %5 {offsets = [0, 1152], sizes = [16, 384], strides = [1, 1]} : vector<16x1536xf32> to vector<16x384xf32>
    %11 = arith.maximumf %9, %10 : vector<16x384xf32>
    %12 = arith.maximumf %8, %11 : vector<16x384xf32>
    %13 = vector.broadcast %3 : vector<1x384xf32> to vector<16x384xf32>
    %14 = arith.addf %12, %13 : vector<16x384xf32>
    %cst_5 = arith.constant 0.000000e+00 : f32
    %15 = vector.broadcast %cst_5 : f32 to vector<16x384xf32>
    %16 = arith.maximumf %14, %15 : vector<16x384xf32>
    %17 = arith.truncf %16 : vector<16x384xf32> to vector<16x384xbf16>
    %18 = vector.extract_strided_slice %2 {offsets = [1, 0], sizes = [1, 128], strides = [1, 1]} : vector<8x384xf32> to vector<1x128xf32>
    %c0_6 = arith.constant 0 : index
    %c0_7 = arith.constant 0 : index
    %19 = vector.load %arg3[%c0_6, %c0_7] : memref<384x512xbf16, #tpu.memory_space<vmem>>, vector<384x512xbf16>
    %cst_8 = arith.constant dense<0.000000e+00> : vector<16x512xf32>
    %20 = tpu.matmul %17, %19, %cst_8 {dimension_numbers = #tpu.dot_dimension_numbers<[1], [0], [0], [1], [0, 0, 1, 1], [], []>} : vector<16x384xbf16>, vector<384x512xbf16>, vector<16x512xf32> -> vector<16x512xf32>
    %21 = vector.extract_strided_slice %20 {offsets = [0, 0], sizes = [16, 128], strides = [1, 1]} : vector<16x512xf32> to vector<16x128xf32>
    %22 = vector.extract_strided_slice %20 {offsets = [0, 128], sizes = [16, 128], strides = [1, 1]} : vector<16x512xf32> to vector<16x128xf32>
    %23 = arith.maximumf %21, %22 : vector<16x128xf32>
    %24 = vector.extract_strided_slice %20 {offsets = [0, 256], sizes = [16, 128], strides = [1, 1]} : vector<16x512xf32> to vector<16x128xf32>
    %25 = vector.extract_strided_slice %20 {offsets = [0, 384], sizes = [16, 128], strides = [1, 1]} : vector<16x512xf32> to vector<16x128xf32>
    %26 = arith.maximumf %24, %25 : vector<16x128xf32>
    %27 = arith.maximumf %23, %26 : vector<16x128xf32>
    %28 = vector.broadcast %18 : vector<1x128xf32> to vector<16x128xf32>
    %29 = arith.addf %27, %28 : vector<16x128xf32>
    %cst_9 = arith.constant 0.000000e+00 : f32
    %30 = vector.broadcast %cst_9 : f32 to vector<16x128xf32>
    %31 = arith.maximumf %29, %30 : vector<16x128xf32>
    %32 = arith.truncf %31 : vector<16x128xf32> to vector<16x128xbf16>
    %c0_10 = arith.constant 0 : index
    %c0_11 = arith.constant 0 : index
    %c0_12 = arith.constant 0 : index
    %33 = vector.load %arg4[%c0_10, %c0_11, %c0_12] : memref<3x128x128xbf16, #tpu.memory_space<vmem>>, vector<1x128x128xbf16>
    %34 = vector.shape_cast %33 : vector<1x128x128xbf16> to vector<128x128xbf16>
    %cst_13 = arith.constant dense<0.000000e+00> : vector<16x128xf32>
    %35 = tpu.matmul %32, %34, %cst_13 {dimension_numbers = #tpu.dot_dimension_numbers<[1], [0], [0], [1], [0, 0, 1, 1], [], []>} : vector<16x128xbf16>, vector<128x128xbf16>, vector<16x128xf32> -> vector<16x128xf32>
    %36 = vector.extract_strided_slice %2 {offsets = [2, 0], sizes = [1, 128], strides = [1, 1]} : vector<8x384xf32> to vector<1x128xf32>
    %37 = vector.broadcast %36 : vector<1x128xf32> to vector<16x128xf32>
    %38 = arith.addf %35, %37 : vector<16x128xf32>
    %cst_14 = arith.constant 0.000000e+00 : f32
    %39 = vector.broadcast %cst_14 : f32 to vector<16x128xf32>
    %40 = arith.maximumf %38, %39 : vector<16x128xf32>
    %41 = arith.truncf %40 : vector<16x128xf32> to vector<16x128xbf16>
    %c1 = arith.constant 1 : index
    %c0_15 = arith.constant 0 : index
    %c0_16 = arith.constant 0 : index
    %42 = vector.load %arg4[%c1, %c0_15, %c0_16] : memref<3x128x128xbf16, #tpu.memory_space<vmem>>, vector<1x128x128xbf16>
    %43 = vector.shape_cast %42 : vector<1x128x128xbf16> to vector<128x128xbf16>
    %cst_17 = arith.constant dense<0.000000e+00> : vector<16x128xf32>
    %44 = tpu.matmul %41, %43, %cst_17 {dimension_numbers = #tpu.dot_dimension_numbers<[1], [0], [0], [1], [0, 0, 1, 1], [], []>} : vector<16x128xbf16>, vector<128x128xbf16>, vector<16x128xf32> -> vector<16x128xf32>
    %45 = vector.extract_strided_slice %2 {offsets = [3, 0], sizes = [1, 128], strides = [1, 1]} : vector<8x384xf32> to vector<1x128xf32>
    %46 = vector.broadcast %45 : vector<1x128xf32> to vector<16x128xf32>
    %47 = arith.addf %44, %46 : vector<16x128xf32>
    %cst_18 = arith.constant 0.000000e+00 : f32
    %48 = vector.broadcast %cst_18 : f32 to vector<16x128xf32>
    %49 = arith.maximumf %47, %48 : vector<16x128xf32>
    %50 = arith.truncf %49 : vector<16x128xf32> to vector<16x128xbf16>
    %c2 = arith.constant 2 : index
    %c0_19 = arith.constant 0 : index
    %c0_20 = arith.constant 0 : index
    %51 = vector.load %arg4[%c2, %c0_19, %c0_20] : memref<3x128x128xbf16, #tpu.memory_space<vmem>>, vector<1x128x128xbf16>
    %52 = vector.shape_cast %51 : vector<1x128x128xbf16> to vector<128x128xbf16>
    %cst_21 = arith.constant dense<0.000000e+00> : vector<16x128xf32>
    %53 = tpu.matmul %50, %52, %cst_21 {dimension_numbers = #tpu.dot_dimension_numbers<[1], [0], [0], [1], [0, 0, 1, 1], [], []>} : vector<16x128xbf16>, vector<128x128xbf16>, vector<16x128xf32> -> vector<16x128xf32>
    %54 = vector.extract_strided_slice %2 {offsets = [4, 0], sizes = [1, 128], strides = [1, 1]} : vector<8x384xf32> to vector<1x128xf32>
    %55 = vector.broadcast %54 : vector<1x128xf32> to vector<16x128xf32>
    %56 = arith.addf %53, %55 : vector<16x128xf32>
    %57 = arith.truncf %56 : vector<16x128xf32> to vector<16x128xbf16>
    %c0_22 = arith.constant 0 : index
    %c0_23 = arith.constant 0 : index
    %58 = vector.load %arg6[%c0_22, %c0_23] : memref<16x128xbf16, #tpu.memory_space<vmem>>, vector<16x128xbf16>
    tpu.vector_store %arg6[%c0_22, %c0_23], %57 {strides = array<i32>} : memref<16x128xbf16, #tpu.memory_space<vmem>>, vector<16x128xbf16>,
    return
  }
  func.func @transform_0(%arg0: i32) -> (i32, i32) {
    %c0_i32 = arith.constant 0 : i32
    %c0_i32_0 = arith.constant 0 : i32
    return %arg0, %c0_i32 : i32, i32
  }
  func.func @transform_1(%arg0: i32) -> (i32, i32) {
    %c0_i32 = arith.constant 0 : i32
    %c0_i32_0 = arith.constant 0 : i32
    %c0_i32_1 = arith.constant 0 : i32
    return %c0_i32, %c0_i32_0 : i32, i32
  }
  func.func @transform_2(%arg0: i32) -> (i32, i32) {
    %c0_i32 = arith.constant 0 : i32
    %c0_i32_0 = arith.constant 0 : i32
    %c0_i32_1 = arith.constant 0 : i32
    return %c0_i32, %c0_i32_0 : i32, i32
  }
  func.func @transform_3(%arg0: i32) -> (i32, i32, i32) {
    %c0_i32 = arith.constant 0 : i32
    %c0_i32_0 = arith.constant 0 : i32
    %c0_i32_1 = arith.constant 0 : i32
    %c0_i32_2 = arith.constant 0 : i32
    return %c0_i32, %c0_i32_0, %c0_i32_1 : i32, i32, i32
  }
  func.func @transform_4(%arg0: i32) -> (i32, i32) {
    %c0_i32 = arith.constant 0 : i32
    %c0_i32_0 = arith.constant 0 : i32
    %c0_i32_1 = arith.constant 0 : i32
    return %c0_i32, %c0_i32_0 : i32, i32
  }
  func.func @transform_5(%arg0: i32) -> (i32, i32) {
    %c0_i32 = arith.constant 0 : i32
    %c0_i32_0 = arith.constant 0 : i32
    return %arg0, %c0_i32 : i32, i32
  }
}

</mosaic_0001>

<llo_original>
// kernel: forward.1
$region0: #{forward.1}
  #allocation0 [shape = 'u32[]', space=smem, size = 0x4, offset = 0x4, fixed_abs, tag = 'smem constant byte address 0x4 - core index']
  #allocation1 [shape = 'u32[144,128]{1,0:T(1,128)}', space=vmem, size = 0x12000, scoped, tag = 'internal scratch']
  %s0 = inlined_call_operand.vmem [shape: f32[16,256], index: 0, kind: input, shape index: {}]
  %s1 = inlined_call_operand.hbm [shape: bf16[256,1536], index: 1, kind: input, shape index: {}]
  %s2 = inlined_call_operand.hbm [shape: bf16[384,512], index: 2, kind: input, shape index: {}]
  %s3 = inlined_call_operand.hbm [shape: bf16[3,128,128], index: 3, kind: input, shape index: {}]
  %s4 = inlined_call_operand.vmem [shape: f32[8,384], index: 4, kind: input, shape index: {}]
  %s5 = inlined_call_operand.vmem [shape: bf16[16,128], index: 5, kind: output, shape index: {}]
  %s6 = sld [smem:[#allocation0]]
  $region42: #{forward.1} parent=0
    _
  %s8 = ssub.s32 1, %s6
  %s9 = scalar_select 0, %s8, %s6
  $region1: #{forward.1} parent=0
    #allocation2 [shape = 'u8[786432]{0}', space=vmem, size = 0xc0000, scoped, tag = 'input window, operand 1, single buffered']
    #allocation3 [shape = 's32[1]{0}', space=sflag, size = 0x4, scoped, tag = 'scoped memory for forward.1']
    #allocation4 [shape = 'u8[393216]{0}', space=vmem, size = 0x60000, scoped, tag = 'input window, operand 2, single buffered']
    #allocation5 [shape = 's32[1]{0}', space=sflag, size = 0x4, scoped, tag = 'scoped memory for forward.1']
    #allocation6 [shape = 'u8[98304]{0}', space=vmem, size = 0x18000, scoped, tag = 'input window, operand 3, single buffered']
    %10 = vsyncpa [#allocation3], 0
    %11 = vsyncpa [#allocation5], 0
    // Predicated region
    $region2: #{forward.1} parent=1 // pred_check
      _
    $region3: #{forward.1} parent=1 // pred_check_branch
      %13 = sbr.rel (0) target = $region5
    $region4: #{forward.1} parent=1 // pred_region
      _
    $region5: #{forward.1} parent=1 // pred_fallthru
      _
    // Predicated region
    $region6: #{forward.1} parent=1 // pred_check
      _
    $region7: #{forward.1} parent=1 // pred_check_branch
      %15 = sbr.rel (0) target = $region9
    $region8: #{forward.1} parent=1 // pred_region
      %s17 = ssub.s32 24576, 24576
      %18 = vsyncadd [#allocation3], %s17
      %s19 = sshll.u32 [#allocation2], 4
      %s20 = int_to_ptr.vmem [resolvable:$true] %s19
      %25 = dma.hbm_to_vmem [thread:$0]  %s1, 24576, %s20, [#allocation3], 768, 768, 48
    $region9: #{forward.1} parent=1 // pred_fallthru
      _
    // Predicated region
    $region10: #{forward.1} parent=1 // pred_check
      _
    $region11: #{forward.1} parent=1 // pred_check_branch
      %27 = sbr.rel (0) target = $region13
    $region12: #{forward.1} parent=1 // pred_region
      %s29 = ssub.s32 12288, 12288
      %30 = vsyncadd [#allocation5], %s29
      %s31 = sshll.u32 [#allocation4], 4
      %s32 = int_to_ptr.vmem [resolvable:$true] %s31
      %37 = dma.hbm_to_vmem [thread:$0]  %s2, 12288, %s32, [#allocation5], 256, 256, 16
    $region13: #{forward.1} parent=1 // pred_fallthru
      _
    // Predicated region
    $region14: #{forward.1} parent=1 // pred_check
      _
    $region15: #{forward.1} parent=1 // pred_check_branch
      %39 = sbr.rel (0) target = $region17
    $region16: #{forward.1} parent=1 // pred_region
      %s41 = ssub.s32 3072, 3072
      %42 = vsyncadd [#allocation5], %s41
      %s43 = sshll.u32 [#allocation6], 4
      %s44 = int_to_ptr.vmem [resolvable:$true] %s43
      %49 = dma.hbm_to_vmem [thread:$0]  %s3, 3072, %s44, [#allocation5], 64, 64, 4
    $region17: #{forward.1} parent=1 // pred_fallthru
      _
    // Predicated region
    $region18: #{forward.1} parent=1 // pred_check
      _
    $region19: #{forward.1} parent=1 // pred_check_branch
      %51 = sbr.rel (0) target = $region21
    $region20: #{forward.1} parent=1 // pred_region
      _
    $region21: #{forward.1} parent=1 // pred_fallthru
      _
    // Predicated region
    $region22: #{forward.1} parent=1 // pred_check
      _
    $region23: #{forward.1} parent=1 // pred_check_branch
      %53 = sbr.rel (0) target = $region25
    $region24: #{forward.1} parent=1 // pred_region
      %54 = dma.done [#allocation3], 24576
    $region25: #{forward.1} parent=1 // pred_fallthru
      _
    // Predicated region
    $region26: #{forward.1} parent=1 // pred_check
      _
    $region27: #{forward.1} parent=1 // pred_check_branch
      %56 = sbr.rel (0) target = $region29
    $region28: #{forward.1} parent=1 // pred_region
      %57 = dma.done [#allocation5], 12288
    $region29: #{forward.1} parent=1 // pred_fallthru
      _
    // Predicated region
    $region30: #{forward.1} parent=1 // pred_check
      _
    $region31: #{forward.1} parent=1 // pred_check_branch
      %59 = sbr.rel (0) target = $region33
    $region32: #{forward.1} parent=1 // pred_region
      %60 = dma.done [#allocation5], 3072
    $region33: #{forward.1} parent=1 // pred_fallthru
      _
    %v62 = vld [vmem:[%s0] sm:$0xff]
    %v63 = vld [vmem:[%s0 + $0x8] sm:$0xff]
    %v64 = vld [vmem:[%s0 + $0x10] sm:$0xff]
    %v65 = vld [vmem:[%s0 + $0x18] sm:$0xff]
    %v66 = vpack.c.bf16 %v64, %v62
    %v67 = vpack.c.bf16 %v65, %v63
    %v68 = vld [vmem:[%s4] sm:$0xff]
    %v69 = vld [vmem:[%s4 + $0x8] sm:$0xff]
    %v70 = vld [vmem:[%s4 + $0x10] sm:$0xff]
    %v71 = vld [vmem:[#allocation2] sm:$0xff]
    %v72 = vld [vmem:[#allocation2 + $0x8] sm:$0xff]
    %v73 = vld [vmem:[#allocation2 + $0x10] sm:$0xff]
    %v74 = vld [vmem:[#allocation2 + $0x18] sm:$0xff]
    %v75 = vld [vmem:[#allocation2 + $0x20] sm:$0xff]
    %v76 = vld [vmem:[#allocation2 + $0x28] sm:$0xff]
    %v77 = vld [vmem:[#allocation2 + $0x30] sm:$0xff]
    %v78 = vld [vmem:[#allocation2 + $0x38] sm:$0xff]
    %v79 = vld [vmem:[#allocation2 + $0x40] sm:$0xff]
    %v80 = vld [vmem:[#allocation2 + $0x48] sm:$0xff]
    %v81 = vld [vmem:[#allocation2 + $0x50] sm:$0xff]
    %v82 = vld [vmem:[#allocation2 + $0x58] sm:$0xff]
    %v83 = vld [vmem:[#allocation2 + $0x60] sm:$0xff]
    %v84 = vld [vmem:[#allocation2 + $0x68] sm:$0xff]
    %v85 = vld [vmem:[#allocation2 + $0x70] sm:$0xff]
    %v86 = vld [vmem:[#allocation2 + $0x78] sm:$0xff]
    %v87 = vld [vmem:[#allocation2 + $0x80] sm:$0xff]
    %v88 = vld [vmem:[#allocation2 + $0x88] sm:$0xff]
    %v89 = vld [vmem:[#allocation2 + $0x90] sm:$0xff]
    %v90 = vld [vmem:[#allocation2 + $0x98] sm:$0xff]
    %v91 = vld [vmem:[#allocation2 + $0xa0] sm:$0xff]
    %v92 = vld [vmem:[#allocation2 + $0xa8] sm:$0xff]
    %v93 = vld [vmem:[#allocation2 + $0xb0] sm:$0xff]
    %v94 = vld [vmem:[#allocation2 + $0xb8] sm:$0xff]
    %v95 = vld [vmem:[#allocation2 + $0xc0] sm:$0xff]
    %v96 = vld [vmem:[#allocation2 + $0xc8] sm:$0xff]
    %v97 = vld [vmem:[#allocation2 + $0xd0] sm:$0xff]
    %v98 = vld [vmem:[#allocation2 + $0xd8] sm:$0xff]
    %v99 = vld [vmem:[#allocation2 + $0xe0] sm:$0xff]
    %v100 = vld [vmem:[#allocation2 + $0xe8] sm:$0xff]
    %v101 = vld [vmem:[#allocation2 + $0xf0] sm:$0xff]
    %v102 = vld [vmem:[#allocation2 + $0xf8] sm:$0xff]
    %v103 = vld [vmem:[#allocation2 + $0x100] sm:$0xff]
    %v104 = vld [vmem:[#allocation2 + $0x108] sm:$0xff]
    %v105 = vld [vmem:[#allocation2 + $0x110] sm:$0xff]
    %v106 = vld [vmem:[#allocation2 + $0x118] sm:$0xff]
    %v107 = vld [vmem:[#allocation2 + $0x120] sm:$0xff]
    %v108 = vld [vmem:[#allocation2 + $0x128] sm:$0xff]
    %v109 = vld [vmem:[#allocation2 + $0x130] sm:$0xff]
    %v110 = vld [vmem:[#allocation2 + $0x138] sm:$0xff]
    %v111 = vld [vmem:[#allocation2 + $0x140] sm:$0xff]
    %v112 = vld [vmem:[#allocation2 + $0x148] sm:$0xff]
    %v113 = vld [vmem:[#allocation2 + $0x150] sm:$0xff]
    %v114 = vld [vmem:[#allocation2 + $0x158] sm:$0xff]
    %v115 = vld [vmem:[#allocation2 + $0x160] sm:$0xff]
    %v116 = vld [vmem:[#allocation2 + $0x168] sm:$0xff]
    %v117 = vld [vmem:[#allocation2 + $0x170] sm:$0xff]
    %v118 = vld [vmem:[#allocation2 + $0x178] sm:$0xff]
    %v119 = vld [vmem:[#allocation2 + $0x180] sm:$0xff]
    %v120 = vld [vmem:[#allocation2 + $0x188] sm:$0xff]
    %v121 = vld [vmem:[#allocation2 + $0x190] sm:$0xff]
    %v122 = vld [vmem:[#allocation2 + $0x198] sm:$0xff]
    %v123 = vld [vmem:[#allocation2 + $0x1a0] sm:$0xff]
    %v124 = vld [vmem:[#allocation2 + $0x1a8] sm:$0xff]
    %v125 = vld [vmem:[#allocation2 + $0x1b0] sm:$0xff]
    %v126 = vld [vmem:[#allocation2 + $0x1b8] sm:$0xff]
    %v127 = vld [vmem:[#allocation2 + $0x1c0] sm:$0xff]
    %v128 = vld [vmem:[#allocation2 + $0x1c8] sm:$0xff]
    %v129 = vld [vmem:[#allocation2 + $0x1d0] sm:$0xff]
    %v130 = vld [vmem:[#allocation2 + $0x1d8] sm:$0xff]
    %v131 = vld [vmem:[#allocation2 + $0x1e0] sm:$0xff]
    %v132 = vld [vmem:[#allocation2 + $0x1e8] sm:$0xff]
    %v133 = vld [vmem:[#allocation2 + $0x1f0] sm:$0xff]
    %v134 = vld [vmem:[#allocation2 + $0x1f8] sm:$0xff]
    %v135 = vld [vmem:[#allocation2 + $0x200] sm:$0xff]
    %v136 = vld [vmem:[#allocation2 + $0x208] sm:$0xff]
    %v137 = vld [vmem:[#allocation2 + $0x210] sm:$0xff]
    %v138 = vld [vmem:[#allocation2 + $0x218] sm:$0xff]
    %v139 = vld [vmem:[#allocation2 + $0x220] sm:$0xff]
    %v140 = vld [vmem:[#allocation2 + $0x228] sm:$0xff]
    %v141 = vld [vmem:[#allocation2 + $0x230] sm:$0xff]
    %v142 = vld [vmem:[#allocation2 + $0x238] sm:$0xff]
    %v143 = vld [vmem:[#allocation2 + $0x240] sm:$0xff]
    %v144 = vld [vmem:[#allocation2 + $0x248] sm:$0xff]
    %v145 = vld [vmem:[#allocation2 + $0x250] sm:$0xff]
    %v146 = vld [vmem:[#allocation2 + $0x258] sm:$0xff]
    %v147 = vld [vmem:[#allocation2 + $0x260] sm:$0xff]
    %v148 = vld [vmem:[#allocation2 + $0x268] sm:$0xff]
    %v149 = vld [vmem:[#allocation2 + $0x270] sm:$0xff]
    %v150 = vld [vmem:[#allocation2 + $0x278] sm:$0xff]
    %v151 = vld [vmem:[#allocation2 + $0x280] sm:$0xff]
    %v152 = vld [vmem:[#allocation2 + $0x288] sm:$0xff]
    %v153 = vld [vmem:[#allocation2 + $0x290] sm:$0xff]
    %v154 = vld [vmem:[#allocation2 + $0x298] sm:$0xff]
    %v155 = vld [vmem:[#allocation2 + $0x2a0] sm:$0xff]
    %v156 = vld [vmem:[#allocation2 + $0x2a8] sm:$0xff]
    %v157 = vld [vmem:[#allocation2 + $0x2b0] sm:$0xff]
    %v158 = vld [vmem:[#allocation2 + $0x2b8] sm:$0xff]
    %v159 = vld [vmem:[#allocation2 + $0x2c0] sm:$0xff]
    %v160 = vld [vmem:[#allocation2 + $0x2c8] sm:$0xff]
    %v161 = vld [vmem:[#allocation2 + $0x2d0] sm:$0xff]
    %v162 = vld [vmem:[#allocation2 + $0x2d8] sm:$0xff]
    %v163 = vld [vmem:[#allocation2 + $0x2e0] sm:$0xff]
    %v164 = vld [vmem:[#allocation2 + $0x2e8] sm:$0xff]
    %v165 = vld [vmem:[#allocation2 + $0x2f0] sm:$0xff]
    %v166 = vld [vmem:[#allocation2 + $0x2f8] sm:$0xff]
    %v167 = vld [vmem:[#allocation2 + $0x300] sm:$0xff]
    %v168 = vld [vmem:[#allocation2 + $0x308] sm:$0xff]
    %v169 = vld [vmem:[#allocation2 + $0x310] sm:$0xff]
    %v170 = vld [vmem:[#allocation2 + $0x318] sm:$0xff]
    %v171 = vld [vmem:[#allocation2 + $0x320] sm:$0xff]
    %v172 = vld [vmem:[#allocation2 + $0x328] sm:$0xff]
    %v173 = vld [vmem:[#allocation2 + $0x330] sm:$0xff]
    %v174 = vld [vmem:[#allocation2 + $0x338] sm:$0xff]
    %v175 = vld [vmem:[#allocation2 + $0x340] sm:$0xff]
    %v176 = vld [vmem:[#allocation2 + $0x348] sm:$0xff]
    %v177 = vld [vmem:[#allocation2 + $0x350] sm:$0xff]
    %v178 = vld [vmem:[#allocation2 + $0x358] sm:$0xff]
    %v179 = vld [vmem:[#allocation2 + $0x360] sm:$0xff]
    %v180 = vld [vmem:[#allocation2 + $0x368] sm:$0xff]
    %v181 = vld [vmem:[#allocation2 + $0x370] sm:$0xff]
    %v182 = vld [vmem:[#allocation2 + $0x378] sm:$0xff]
    %v183 = vld [vmem:[#allocation2 + $0x380] sm:$0xff]
    %v184 = vld [vmem:[#allocation2 + $0x388] sm:$0xff]
    %v185 = vld [vmem:[#allocation2 + $0x390] sm:$0xff]
    %v186 = vld [vmem:[#allocation2 + $0x398] sm:$0xff]
    %v187 = vld [vmem:[#allocation2 + $0x3a0] sm:$0xff]
    %v188 = vld [vmem:[#allocation2 + $0x3a8] sm:$0xff]
    %v189 = vld [vmem:[#allocation2 + $0x3b0] sm:$0xff]
    %v190 = vld [vmem:[#allocation2 + $0x3b8] sm:$0xff]
    %v191 = vld [vmem:[#allocation2 + $0x3c0] sm:$0xff]
    %v192 = vld [vmem:[#allocation2 + $0x3c8] sm:$0xff]
    %v193 = vld [vmem:[#allocation2 + $0x3d0] sm:$0xff]
    %v194 = vld [vmem:[#allocation2 + $0x3d8] sm:$0xff]
    %v195 = vld [vmem:[#allocation2 + $0x3e0] sm:$0xff]
    %v196 = vld [vmem:[#allocation2 + $0x3e8] sm:$0xff]
    %v197 = vld [vmem:[#allocation2 + $0x3f0] sm:$0xff]
    %v198 = vld [vmem:[#allocation2 + $0x3f8] sm:$0xff]
    %v199 = vld [vmem:[#allocation2 + $0x400] sm:$0xff]
    %v200 = vld [vmem:[#allocation2 + $0x408] sm:$0xff]
    %v201 = vld [vmem:[#allocation2 + $0x410] sm:$0xff]
    %v202 = vld [vmem:[#allocation2 + $0x418] sm:$0xff]
    %v203 = vld [vmem:[#allocation2 + $0x420] sm:$0xff]
    %v204 = vld [vmem:[#allocation2 + $0x428] sm:$0xff]
    %v205 = vld [vmem:[#allocation2 + $0x430] sm:$0xff]
    %v206 = vld [vmem:[#allocation2 + $0x438] sm:$0xff]
    %v207 = vld [vmem:[#allocation2 + $0x440] sm:$0xff]
    %v208 = vld [vmem:[#allocation2 + $0x448] sm:$0xff]
    %v209 = vld [vmem:[#allocation2 + $0x450] sm:$0xff]
    %v210 = vld [vmem:[#allocation2 + $0x458] sm:$0xff]
    %v211 = vld [vmem:[#allocation2 + $0x460] sm:$0xff]
    %v212 = vld [vmem:[#allocation2 + $0x468] sm:$0xff]
    %v213 = vld [vmem:[#allocation2 + $0x470] sm:$0xff]
    %v214 = vld [vmem:[#allocation2 + $0x478] sm:$0xff]
    %v215 = vld [vmem:[#allocation2 + $0x480] sm:$0xff]
    %v216 = vld [vmem:[#allocation2 + $0x488] sm:$0xff]
    %v217 = vld [vmem:[#allocation2 + $0x490] sm:$0xff]
    %v218 = vld [vmem:[#allocation2 + $0x498] sm:$0xff]
    %v219 = vld [vmem:[#allocation2 + $0x4a0] sm:$0xff]
    %v220 = vld [vmem:[#allocation2 + $0x4a8] sm:$0xff]
    %v221 = vld [vmem:[#allocation2 + $0x4b0] sm:$0xff]
    %v222 = vld [vmem:[#allocation2 + $0x4b8] sm:$0xff]
    %v223 = vld [vmem:[#allocation2 + $0x4c0] sm:$0xff]
    %v224 = vld [vmem:[#allocation2 + $0x4c8] sm:$0xff]
    %v225 = vld [vmem:[#allocation2 + $0x4d0] sm:$0xff]
    %v226 = vld [vmem:[#allocation2 + $0x4d8] sm:$0xff]
    %v227 = vld [vmem:[#allocation2 + $0x4e0] sm:$0xff]
    %v228 = vld [vmem:[#allocation2 + $0x4e8] sm:$0xff]
    %v229 = vld [vmem:[#allocation2 + $0x4f0] sm:$0xff]
    %v230 = vld [vmem:[#allocation2 + $0x4f8] sm:$0xff]
    %v231 = vld [vmem:[#allocation2 + $0x500] sm:$0xff]
    %v232 = vld [vmem:[#allocation2 + $0x508] sm:$0xff]
    %v233 = vld [vmem:[#allocation2 + $0x510] sm:$0xff]
    %v234 = vld [vmem:[#allocation2 + $0x518] sm:$0xff]
    %v235 = vld [vmem:[#allocation2 + $0x520] sm:$0xff]
    %v236 = vld [vmem:[#allocation2 + $0x528] sm:$0xff]
    %v237 = vld [vmem:[#allocation2 + $0x530] sm:$0xff]
    %v238 = vld [vmem:[#allocation2 + $0x538] sm:$0xff]
    %v239 = vld [vmem:[#allocation2 + $0x540] sm:$0xff]
    %v240 = vld [vmem:[#allocation2 + $0x548] sm:$0xff]
    %v241 = vld [vmem:[#allocation2 + $0x550] sm:$0xff]
    %v242 = vld [vmem:[#allocation2 + $0x558] sm:$0xff]
    %v243 = vld [vmem:[#allocation2 + $0x560] sm:$0xff]
    %v244 = vld [vmem:[#allocation2 + $0x568] sm:$0xff]
    %v245 = vld [vmem:[#allocation2 + $0x570] sm:$0xff]
    %v246 = vld [vmem:[#allocation2 + $0x578] sm:$0xff]
    %v247 = vld [vmem:[#allocation2 + $0x580] sm:$0xff]
    %v248 = vld [vmem:[#allocation2 + $0x588] sm:$0xff]
    %v249 = vld [vmem:[#allocation2 + $0x590] sm:$0xff]
    %v250 = vld [vmem:[#allocation2 + $0x598] sm:$0xff]
    %v251 = vld [vmem:[#allocation2 + $0x5a0] sm:$0xff]
    %v252 = vld [vmem:[#allocation2 + $0x5a8] sm:$0xff]
    %v253 = vld [vmem:[#allocation2 + $0x5b0] sm:$0xff]
    %v254 = vld [vmem:[#allocation2 + $0x5b8] sm:$0xff]
    %v255 = vld [vmem:[#allocation2 + $0x5c0] sm:$0xff]
    %v256 = vld [vmem:[#allocation2 + $0x5c8] sm:$0xff]
    %v257 = vld [vmem:[#allocation2 + $0x5d0] sm:$0xff]
    %v258 = vld [vmem:[#allocation2 + $0x5d8] sm:$0xff]
    %v259 = vld [vmem:[#allocation2 + $0x5e0] sm:$0xff]
    %v260 = vld [vmem:[#allocation2 + $0x5e8] sm:$0xff]
    %v261 = vld [vmem:[#allocation2 + $0x5f0] sm:$0xff]
    %v262 = vld [vmem:[#allocation2 + $0x5f8] sm:$0xff]
    %v455 = vunpack.c.l.b16 %v71
    %v456 = vunpack.c.h.b16 %v71
    %v457 = vunpack.c.l.b16 %v72
    %v458 = vunpack.c.h.b16 %v72
    %v459 = vunpack.c.l.b16 %v73
    %v460 = vunpack.c.h.b16 %v73
    %v461 = vunpack.c.l.b16 %v74
    %v462 = vunpack.c.h.b16 %v74
    %v463 = vunpack.c.l.b16 %v75
    %v464 = vunpack.c.h.b16 %v75
    %v465 = vunpack.c.l.b16 %v76
    %v466 = vunpack.c.h.b16 %v76
    %v467 = vunpack.c.l.b16 %v77
    %v468 = vunpack.c.h.b16 %v77
    %v469 = vunpack.c.l.b16 %v78
    %v470 = vunpack.c.h.b16 %v78
    %v471 = vunpack.c.l.b16 %v79
    %v472 = vunpack.c.h.b16 %v79
    %v473 = vunpack.c.l.b16 %v80
    %v474 = vunpack.c.h.b16 %v80
    %v475 = vunpack.c.l.b16 %v81
    %v476 = vunpack.c.h.b16 %v81
    %v477 = vunpack.c.l.b16 %v82
    %v478 = vunpack.c.h.b16 %v82
    %v479 = vunpack.c.l.b16 %v83
    %v480 = vunpack.c.h.b16 %v83
    %v481 = vunpack.c.l.b16 %v84
    %v482 = vunpack.c.h.b16 %v84
    %v483 = vunpack.c.l.b16 %v85
    %v484 = vunpack.c.h.b16 %v85
    %v485 = vunpack.c.l.b16 %v86
    %v486 = vunpack.c.h.b16 %v86
    %v487 = vunpack.c.l.b16 %v87
    %v488 = vunpack.c.h.b16 %v87
    %v489 = vunpack.c.l.b16 %v88
    %v490 = vunpack.c.h.b16 %v88
    %v491 = vunpack.c.l.b16 %v89
    %v492 = vunpack.c.h.b16 %v89
    %v493 = vunpack.c.l.b16 %v90
    %v494 = vunpack.c.h.b16 %v90
    %v495 = vunpack.c.l.b16 %v91
    %v496 = vunpack.c.h.b16 %v91
    %v497 = vunpack.c.l.b16 %v92
    %v498 = vunpack.c.h.b16 %v92
    %v499 = vunpack.c.l.b16 %v93
    %v500 = vunpack.c.h.b16 %v93
    %v501 = vunpack.c.l.b16 %v94
    %v502 = vunpack.c.h.b16 %v94
    %v503 = vunpack.c.l.b16 %v95
    %v504 = vunpack.c.h.b16 %v95
    %v505 = vunpack.c.l.b16 %v96
    %v506 = vunpack.c.h.b16 %v96
    %v507 = vunpack.c.l.b16 %v97
    %v508 = vunpack.c.h.b16 %v97
    %v509 = vunpack.c.l.b16 %v98
    %v510 = vunpack.c.h.b16 %v98
    %v511 = vunpack.c.l.b16 %v99
    %v512 = vunpack.c.h.b16 %v99
    %v513 = vunpack.c.l.b16 %v100
    %v514 = vunpack.c.h.b16 %v100
    %v515 = vunpack.c.l.b16 %v101
    %v516 = vunpack.c.h.b16 %v101
    %v517 = vunpack.c.l.b16 %v102
    %v518 = vunpack.c.h.b16 %v102
    %v519 = vunpack.c.l.b16 %v103
    %v520 = vunpack.c.h.b16 %v103
    %v521 = vunpack.c.l.b16 %v104
    %v522 = vunpack.c.h.b16 %v104
    %v523 = vunpack.c.l.b16 %v105
    %v524 = vunpack.c.h.b16 %v105
    %v525 = vunpack.c.l.b16 %v106
    %v526 = vunpack.c.h.b16 %v106
    %v527 = vunpack.c.l.b16 %v107
    %v528 = vunpack.c.h.b16 %v107
    %v529 = vunpack.c.l.b16 %v108
    %v530 = vunpack.c.h.b16 %v108
    %v531 = vunpack.c.l.b16 %v109
    %v532 = vunpack.c.h.b16 %v109
    %v533 = vunpack.c.l.b16 %v110
    %v534 = vunpack.c.h.b16 %v110
    %v535 = vunpack.c.l.b16 %v111
    %v536 = vunpack.c.h.b16 %v111
    %v537 = vunpack.c.l.b16 %v112
    %v538 = vunpack.c.h.b16 %v112
    %v539 = vunpack.c.l.b16 %v113
    %v540 = vunpack.c.h.b16 %v113
    %v541 = vunpack.c.l.b16 %v114
    %v542 = vunpack.c.h.b16 %v114
    %v543 = vunpack.c.l.b16 %v115
    %v544 = vunpack.c.h.b16 %v115
    %v545 = vunpack.c.l.b16 %v116
    %v546 = vunpack.c.h.b16 %v116
    %v547 = vunpack.c.l.b16 %v117
    %v548 = vunpack.c.h.b16 %v117
    %v549 = vunpack.c.l.b16 %v118
    %v550 = vunpack.c.h.b16 %v118
    %v551 = vunpack.c.l.b16 %v119
    %v552 = vunpack.c.h.b16 %v119
    %v553 = vunpack.c.l.b16 %v120
    %v554 = vunpack.c.h.b16 %v120
    %v555 = vunpack.c.l.b16 %v121
    %v556 = vunpack.c.h.b16 %v121
    %v557 = vunpack.c.l.b16 %v122
    %v558 = vunpack.c.h.b16 %v122
    %v559 = vunpack.c.l.b16 %v123
    %v560 = vunpack.c.h.b16 %v123
    %v561 = vunpack.c.l.b16 %v124
    %v562 = vunpack.c.h.b16 %v124
    %v563 = vunpack.c.l.b16 %v125
    %v564 = vunpack.c.h.b16 %v125
    %v565 = vunpack.c.l.b16 %v126
    %v566 = vunpack.c.h.b16 %v126
    %v567 = vunpack.c.l.b16 %v127
    %v568 = vunpack.c.h.b16 %v127
    %v569 = vunpack.c.l.b16 %v128
    %v570 = vunpack.c.h.b16 %v128
    %v571 = vunpack.c.l.b16 %v129
    %v572 = vunpack.c.h.b16 %v129
    %v573 = vunpack.c.l.b16 %v130
    %v574 = vunpack.c.h.b16 %v130
    %v575 = vunpack.c.l.b16 %v131
    %v576 = vunpack.c.h.b16 %v131
    %v577 = vunpack.c.l.b16 %v132
    %v578 = vunpack.c.h.b16 %v132
    %v579 = vunpack.c.l.b16 %v133
    %v580 = vunpack.c.h.b16 %v133
    %v581 = vunpack.c.l.b16 %v134
    %v582 = vunpack.c.h.b16 %v134
    %v583 = vunpack.c.l.b16 %v135
    %v584 = vunpack.c.h.b16 %v135
    %v585 = vunpack.c.l.b16 %v136
    %v586 = vunpack.c.h.b16 %v136
    %v587 = vunpack.c.l.b16 %v137
    %v588 = vunpack.c.h.b16 %v137
    %v589 = vunpack.c.l.b16 %v138
    %v590 = vunpack.c.h.b16 %v138
    %v591 = vunpack.c.l.b16 %v139
    %v592 = vunpack.c.h.b16 %v139
    %v593 = vunpack.c.l.b16 %v140
    %v594 = vunpack.c.h.b16 %v140
    %v595 = vunpack.c.l.b16 %v141
    %v596 = vunpack.c.h.b16 %v141
    %v597 = vunpack.c.l.b16 %v142
    %v598 = vunpack.c.h.b16 %v142
    %v599 = vunpack.c.l.b16 %v143
    %v600 = vunpack.c.h.b16 %v143
    %v601 = vunpack.c.l.b16 %v144
    %v602 = vunpack.c.h.b16 %v144
    %v603 = vunpack.c.l.b16 %v145
    %v604 = vunpack.c.h.b16 %v145
    %v605 = vunpack.c.l.b16 %v146
    %v606 = vunpack.c.h.b16 %v146
    %v607 = vunpack.c.l.b16 %v147
    %v608 = vunpack.c.h.b16 %v147
    %v609 = vunpack.c.l.b16 %v148
    %v610 = vunpack.c.h.b16 %v148
    %v611 = vunpack.c.l.b16 %v149
    %v612 = vunpack.c.h.b16 %v149
    %v613 = vunpack.c.l.b16 %v150
    %v614 = vunpack.c.h.b16 %v150
    %v615 = vunpack.c.l.b16 %v151
    %v616 = vunpack.c.h.b16 %v151
    %v617 = vunpack.c.l.b16 %v152
    %v618 = vunpack.c.h.b16 %v152
    %v619 = vunpack.c.l.b16 %v153
    %v620 = vunpack.c.h.b16 %v153
    %v621 = vunpack.c.l.b16 %v154
    %v622 = vunpack.c.h.b16 %v154
    %v623 = vunpack.c.l.b16 %v155
    %v624 = vunpack.c.h.b16 %v155
    %v625 = vunpack.c.l.b16 %v156
    %v626 = vunpack.c.h.b16 %v156
    %v627 = vunpack.c.l.b16 %v157
    %v628 = vunpack.c.h.b16 %v157
    %v629 = vunpack.c.l.b16 %v158
    %v630 = vunpack.c.h.b16 %v158
    %v631 = vunpack.c.l.b16 %v159
    %v632 = vunpack.c.h.b16 %v159
    %v633 = vunpack.c.l.b16 %v160
    %v634 = vunpack.c.h.b16 %v160
    %v635 = vunpack.c.l.b16 %v161
    %v636 = vunpack.c.h.b16 %v161
    %v637 = vunpack.c.l.b16 %v162
    %v638 = vunpack.c.h.b16 %v162
    %v639 = vunpack.c.l.b16 %v163
    %v640 = vunpack.c.h.b16 %v163
    %v641 = vunpack.c.l.b16 %v164
    %v642 = vunpack.c.h.b16 %v164
    %v643 = vunpack.c.l.b16 %v165
    %v644 = vunpack.c.h.b16 %v165
    %v645 = vunpack.c.l.b16 %v166
    %v646 = vunpack.c.h.b16 %v166
    %v647 = vunpack.c.l.b16 %v167
    %v648 = vunpack.c.h.b16 %v167
    %v649 = vunpack.c.l.b16 %v168
    %v650 = vunpack.c.h.b16 %v168
    %v651 = vunpack.c.l.b16 %v169
    %v652 = vunpack.c.h.b16 %v169
    %v653 = vunpack.c.l.b16 %v170
    %v654 = vunpack.c.h.b16 %v170
    %v655 = vunpack.c.l.b16 %v171
    %v656 = vunpack.c.h.b16 %v171
    %v657 = vunpack.c.l.b16 %v172
    %v658 = vunpack.c.h.b16 %v172
    %v659 = vunpack.c.l.b16 %v173
    %v660 = vunpack.c.h.b16 %v173
    %v661 = vunpack.c.l.b16 %v174
    %v662 = vunpack.c.h.b16 %v174
    %v663 = vunpack.c.l.b16 %v175
    %v664 = vunpack.c.h.b16 %v175
    %v665 = vunpack.c.l.b16 %v176
    %v666 = vunpack.c.h.b16 %v176
    %v667 = vunpack.c.l.b16 %v177
    %v668 = vunpack.c.h.b16 %v177
    %v669 = vunpack.c.l.b16 %v178
    %v670 = vunpack.c.h.b16 %v178
    %v671 = vunpack.c.l.b16 %v179
    %v672 = vunpack.c.h.b16 %v179
    %v673 = vunpack.c.l.b16 %v180
    %v674 = vunpack.c.h.b16 %v180
    %v675 = vunpack.c.l.b16 %v181
    %v676 = vunpack.c.h.b16 %v181
    %v677 = vunpack.c.l.b16 %v182
    %v678 = vunpack.c.h.b16 %v182
    %v679 = vunpack.c.l.b16 %v183
    %v680 = vunpack.c.h.b16 %v183
    %v681 = vunpack.c.l.b16 %v184
    %v682 = vunpack.c.h.b16 %v184
    %v683 = vunpack.c.l.b16 %v185
    %v684 = vunpack.c.h.b16 %v185
    %v685 = vunpack.c.l.b16 %v186
    %v686 = vunpack.c.h.b16 %v186
    %v687 = vunpack.c.l.b16 %v187
    %v688 = vunpack.c.h.b16 %v187
    %v689 = vunpack.c.l.b16 %v188
    %v690 = vunpack.c.h.b16 %v188
    %v691 = vunpack.c.l.b16 %v189
    %v692 = vunpack.c.h.b16 %v189
    %v693 = vunpack.c.l.b16 %v190
    %v694 = vunpack.c.h.b16 %v190
    %v695 = vunpack.c.l.b16 %v191
    %v696 = vunpack.c.h.b16 %v191
    %v697 = vunpack.c.l.b16 %v192
    %v698 = vunpack.c.h.b16 %v192
    %v699 = vunpack.c.l.b16 %v193
    %v700 = vunpack.c.h.b16 %v193
    %v701 = vunpack.c.l.b16 %v194
    %v702 = vunpack.c.h.b16 %v194
    %v703 = vunpack.c.l.b16 %v195
    %v704 = vunpack.c.h.b16 %v195
    %v705 = vunpack.c.l.b16 %v196
    %v706 = vunpack.c.h.b16 %v196
    %v707 = vunpack.c.l.b16 %v197
    %v708 = vunpack.c.h.b16 %v197
    %v709 = vunpack.c.l.b16 %v198
    %v710 = vunpack.c.h.b16 %v198
    %v711 = vunpack.c.l.b16 %v199
    %v712 = vunpack.c.h.b16 %v199
    %v713 = vunpack.c.l.b16 %v200
    %v714 = vunpack.c.h.b16 %v200
    %v715 = vunpack.c.l.b16 %v201
    %v716 = vunpack.c.h.b16 %v201
    %v717 = vunpack.c.l.b16 %v202
    %v718 = vunpack.c.h.b16 %v202
    %v719 = vunpack.c.l.b16 %v203
    %v720 = vunpack.c.h.b16 %v203
    %v721 = vunpack.c.l.b16 %v204
    %v722 = vunpack.c.h.b16 %v204
    %v723 = vunpack.c.l.b16 %v205
    %v724 = vunpack.c.h.b16 %v205
    %v725 = vunpack.c.l.b16 %v206
    %v726 = vunpack.c.h.b16 %v206
    %v727 = vunpack.c.l.b16 %v207
    %v728 = vunpack.c.h.b16 %v207
    %v729 = vunpack.c.l.b16 %v208
    %v730 = vunpack.c.h.b16 %v208
    %v731 = vunpack.c.l.b16 %v209
    %v732 = vunpack.c.h.b16 %v209
    %v733 = vunpack.c.l.b16 %v210
    %v734 = vunpack.c.h.b16 %v210
    %v735 = vunpack.c.l.b16 %v211
    %v736 = vunpack.c.h.b16 %v211
    %v737 = vunpack.c.l.b16 %v212
    %v738 = vunpack.c.h.b16 %v212
    %v739 = vunpack.c.l.b16 %v213
    %v740 = vunpack.c.h.b16 %v213
    %v741 = vunpack.c.l.b16 %v214
    %v742 = vunpack.c.h.b16 %v214
    %v743 = vunpack.c.l.b16 %v215
    %v744 = vunpack.c.h.b16 %v215
    %v745 = vunpack.c.l.b16 %v216
    %v746 = vunpack.c.h.b16 %v216
    %v747 = vunpack.c.l.b16 %v217
    %v748 = vunpack.c.h.b16 %v217
    %v749 = vunpack.c.l.b16 %v218
    %v750 = vunpack.c.h.b16 %v218
    %v751 = vunpack.c.l.b16 %v219
    %v752 = vunpack.c.h.b16 %v219
    %v753 = vunpack.c.l.b16 %v220
    %v754 = vunpack.c.h.b16 %v220
    %v755 = vunpack.c.l.b16 %v221
    %v756 = vunpack.c.h.b16 %v221
    %v757 = vunpack.c.l.b16 %v222
    %v758 = vunpack.c.h.b16 %v222
    %v759 = vunpack.c.l.b16 %v223
    %v760 = vunpack.c.h.b16 %v223
    %v761 = vunpack.c.l.b16 %v224
    %v762 = vunpack.c.h.b16 %v224
    %v763 = vunpack.c.l.b16 %v225
    %v764 = vunpack.c.h.b16 %v225
    %v765 = vunpack.c.l.b16 %v226
    %v766 = vunpack.c.h.b16 %v226
    %v767 = vunpack.c.l.b16 %v227
    %v768 = vunpack.c.h.b16 %v227
    %v769 = vunpack.c.l.b16 %v228
    %v770 = vunpack.c.h.b16 %v228
    %v771 = vunpack.c.l.b16 %v229
    %v772 = vunpack.c.h.b16 %v229
    %v773 = vunpack.c.l.b16 %v230
    %v774 = vunpack.c.h.b16 %v230
    %v775 = vunpack.c.l.b16 %v231
    %v776 = vunpack.c.h.b16 %v231
    %v777 = vunpack.c.l.b16 %v232
    %v778 = vunpack.c.h.b16 %v232
    %v779 = vunpack.c.l.b16 %v233
    %v780 = vunpack.c.h.b16 %v233
    %v781 = vunpack.c.l.b16 %v234
    %v782 = vunpack.c.h.b16 %v234
    %v783 = vunpack.c.l.b16 %v235
    %v784 = vunpack.c.h.b16 %v235
    %v785 = vunpack.c.l.b16 %v236
    %v786 = vunpack.c.h.b16 %v236
    %v787 = vunpack.c.l.b16 %v237
    %v788 = vunpack.c.h.b16 %v237
    %v789 = vunpack.c.l.b16 %v238
    %v790 = vunpack.c.h.b16 %v238
    %v791 = vunpack.c.l.b16 %v239
    %v792 = vunpack.c.h.b16 %v239
    %v793 = vunpack.c.l.b16 %v240
    %v794 = vunpack.c.h.b16 %v240
    %v795 = vunpack.c.l.b16 %v241
    %v796 = vunpack.c.h.b16 %v241
    %v797 = vunpack.c.l.b16 %v242
    %v798 = vunpack.c.h.b16 %v242
    %v799 = vunpack.c.l.b16 %v243
    %v800 = vunpack.c.h.b16 %v243
    %v801 = vunpack.c.l.b16 %v244
    %v802 = vunpack.c.h.b16 %v244
    %v803 = vunpack.c.l.b16 %v245
    %v804 = vunpack.c.h.b16 %v245
    %v805 = vunpack.c.l.b16 %v246
    %v806 = vunpack.c.h.b16 %v246
    %v807 = vunpack.c.l.b16 %v247
    %v808 = vunpack.c.h.b16 %v247
    %v809 = vunpack.c.l.b16 %v248
    %v810 = vunpack.c.h.b16 %v248
    %v811 = vunpack.c.l.b16 %v249
    %v812 = vunpack.c.h.b16 %v249
    %v813 = vunpack.c.l.b16 %v250
    %v814 = vunpack.c.h.b16 %v250
    %v815 = vunpack.c.l.b16 %v251
    %v816 = vunpack.c.h.b16 %v251
    %v817 = vunpack.c.l.b16 %v252
    %v818 = vunpack.c.h.b16 %v252
    %v819 = vunpack.c.l.b16 %v253
    %v820 = vunpack.c.h.b16 %v253
    %v821 = vunpack.c.l.b16 %v254
    %v822 = vunpack.c.h.b16 %v254
    %v823 = vunpack.c.l.b16 %v255
    %v824 = vunpack.c.h.b16 %v255
    %v825 = vunpack.c.l.b16 %v256
    %v826 = vunpack.c.h.b16 %v256
    %v827 = vunpack.c.l.b16 %v257
    %v828 = vunpack.c.h.b16 %v257
    %v829 = vunpack.c.l.b16 %v258
    %v830 = vunpack.c.h.b16 %v258
    %v831 = vunpack.c.l.b16 %v259
    %v832 = vunpack.c.h.b16 %v259
    %v833 = vunpack.c.l.b16 %v260
    %v834 = vunpack.c.h.b16 %v260
    %v835 = vunpack.c.l.b16 %v261
    %v836 = vunpack.c.h.b16 %v261
    %v837 = vunpack.c.l.b16 %v262
    %v838 = vunpack.c.h.b16 %v262
    %v839 = vpack.c.b16 %v467, %v455
    %v840 = vpack.c.b16 %v468, %v456
    %v841 = vpack.c.b16 %v469, %v457
    %v842 = vpack.c.b16 %v470, %v458
    %v843 = vpack.c.b16 %v471, %v459
    %v844 = vpack.c.b16 %v472, %v460
    %v845 = vpack.c.b16 %v473, %v461
    %v846 = vpack.c.b16 %v474, %v462
    %v847 = vpack.c.b16 %v475, %v463
    %v848 = vpack.c.b16 %v476, %v464
    %v849 = vpack.c.b16 %v477, %v465
    %v850 = vpack.c.b16 %v478, %v466
    %v851 = vpack.c.b16 %v491, %v479
    %v852 = vpack.c.b16 %v492, %v480
    %v853 = vpack.c.b16 %v493, %v481
    %v854 = vpack.c.b16 %v494, %v482
    %v855 = vpack.c.b16 %v495, %v483
    %v856 = vpack.c.b16 %v496, %v484
    %v857 = vpack.c.b16 %v497, %v485
    %v858 = vpack.c.b16 %v498, %v486
    %v859 = vpack.c.b16 %v499, %v487
    %v860 = vpack.c.b16 %v500, %v488
    %v861 = vpack.c.b16 %v501, %v489
    %v862 = vpack.c.b16 %v502, %v490
    %v863 = vpack.c.b16 %v515, %v503
    %v864 = vpack.c.b16 %v516, %v504
    %v865 = vpack.c.b16 %v517, %v505
    %v866 = vpack.c.b16 %v518, %v506
    %v867 = vpack.c.b16 %v519, %v507
    %v868 = vpack.c.b16 %v520, %v508
    %v869 = vpack.c.b16 %v521, %v509
    %v870 = vpack.c.b16 %v522, %v510
    %v871 = vpack.c.b16 %v523, %v511
    %v872 = vpack.c.b16 %v524, %v512
    %v873 = vpack.c.b16 %v525, %v513
    %v874 = vpack.c.b16 %v526, %v514
    %v875 = vpack.c.b16 %v539, %v527
    %v876 = vpack.c.b16 %v540, %v528
    %v877 = vpack.c.b16 %v541, %v529
    %v878 = vpack.c.b16 %v542, %v530
    %v879 = vpack.c.b16 %v543, %v531
    %v880 = vpack.c.b16 %v544, %v532
    %v881 = vpack.c.b16 %v545, %v533
    %v882 = vpack.c.b16 %v546, %v534
    %v883 = vpack.c.b16 %v547, %v535
    %v884 = vpack.c.b16 %v548, %v536
    %v885 = vpack.c.b16 %v549, %v537
    %v886 = vpack.c.b16 %v550, %v538
    %v887 = vpack.c.b16 %v563, %v551
    %v888 = vpack.c.b16 %v564, %v552
    %v889 = vpack.c.b16 %v565, %v553
    %v890 = vpack.c.b16 %v566, %v554
    %v891 = vpack.c.b16 %v567, %v555
    %v892 = vpack.c.b16 %v568, %v556
    %v893 = vpack.c.b16 %v569, %v557
    %v894 = vpack.c.b16 %v570, %v558
    %v895 = vpack.c.b16 %v571, %v559
    %v896 = vpack.c.b16 %v572, %v560
    %v897 = vpack.c.b16 %v573, %v561
    %v898 = vpack.c.b16 %v574, %v562
    %v899 = vpack.c.b16 %v587, %v575
    %v900 = vpack.c.b16 %v588, %v576
    %v901 = vpack.c.b16 %v589, %v577
    %v902 = vpack.c.b16 %v590, %v578
    %v903 = vpack.c.b16 %v591, %v579
    %v904 = vpack.c.b16 %v592, %v580
    %v905 = vpack.c.b16 %v593, %v581
    %v906 = vpack.c.b16 %v594, %v582
    %v907 = vpack.c.b16 %v595, %v583
    %v908 = vpack.c.b16 %v596, %v584
    %v909 = vpack.c.b16 %v597, %v585
    %v910 = vpack.c.b16 %v598, %v586
    %v911 = vpack.c.b16 %v611, %v599
    %v912 = vpack.c.b16 %v612, %v600
    %v913 = vpack.c.b16 %v613, %v601
    %v914 = vpack.c.b16 %v614, %v602
    %v915 = vpack.c.b16 %v615, %v603
    %v916 = vpack.c.b16 %v616, %v604
    %v917 = vpack.c.b16 %v617, %v605
    %v918 = vpack.c.b16 %v618, %v606
    %v919 = vpack.c.b16 %v619, %v607
    %v920 = vpack.c.b16 %v620, %v608
    %v921 = vpack.c.b16 %v621, %v609
    %v922 = vpack.c.b16 %v622, %v610
    %v923 = vpack.c.b16 %v635, %v623
    %v924 = vpack.c.b16 %v636, %v624
    %v925 = vpack.c.b16 %v637, %v625
    %v926 = vpack.c.b16 %v638, %v626
    %v927 = vpack.c.b16 %v639, %v627
    %v928 = vpack.c.b16 %v640, %v628
    %v929 = vpack.c.b16 %v641, %v629
    %v930 = vpack.c.b16 %v642, %v630
    %v931 = vpack.c.b16 %v643, %v631
    %v932 = vpack.c.b16 %v644, %v632
    %v933 = vpack.c.b16 %v645, %v633
    %v934 = vpack.c.b16 %v646, %v634
    %v935 = vpack.c.b16 %v659, %v647
    %v936 = vpack.c.b16 %v660, %v648
    %v937 = vpack.c.b16 %v661, %v649
    %v938 = vpack.c.b16 %v662, %v650
    %v939 = vpack.c.b16 %v663, %v651
    %v940 = vpack.c.b16 %v664, %v652
    %v941 = vpack.c.b16 %v665, %v653
    %v942 = vpack.c.b16 %v666, %v654
    %v943 = vpack.c.b16 %v667, %v655
    %v944 = vpack.c.b16 %v668, %v656
    %v945 = vpack.c.b16 %v669, %v657
    %v946 = vpack.c.b16 %v670, %v658
    %v947 = vpack.c.b16 %v683, %v671
    %v948 = vpack.c.b16 %v684, %v672
    %v949 = vpack.c.b16 %v685, %v673
    %v950 = vpack.c.b16 %v686, %v674
    %v951 = vpack.c.b16 %v687, %v675
    %v952 = vpack.c.b16 %v688, %v676
    %v953 = vpack.c.b16 %v689, %v677
    %v954 = vpack.c.b16 %v690, %v678
    %v955 = vpack.c.b16 %v691, %v679
    %v956 = vpack.c.b16 %v692, %v680
    %v957 = vpack.c.b16 %v693, %v681
    %v958 = vpack.c.b16 %v694, %v682
    %v959 = vpack.c.b16 %v707, %v695
    %v960 = vpack.c.b16 %v708, %v696
    %v961 = vpack.c.b16 %v709, %v697
    %v962 = vpack.c.b16 %v710, %v698
    %v963 = vpack.c.b16 %v711, %v699
    %v964 = vpack.c.b16 %v712, %v700
    %v965 = vpack.c.b16 %v713, %v701
    %v966 = vpack.c.b16 %v714, %v702
    %v967 = vpack.c.b16 %v715, %v703
    %v968 = vpack.c.b16 %v716, %v704
    %v969 = vpack.c.b16 %v717, %v705
    %v970 = vpack.c.b16 %v718, %v706
    %v971 = vpack.c.b16 %v731, %v719
    %v972 = vpack.c.b16 %v732, %v720
    %v973 = vpack.c.b16 %v733, %v721
    %v974 = vpack.c.b16 %v734, %v722
    %v975 = vpack.c.b16 %v735, %v723
    %v976 = vpack.c.b16 %v736, %v724
    %v977 = vpack.c.b16 %v737, %v725
    %v978 = vpack.c.b16 %v738, %v726
    %v979 = vpack.c.b16 %v739, %v727
    %v980 = vpack.c.b16 %v740, %v728
    %v981 = vpack.c.b16 %v741, %v729
    %v982 = vpack.c.b16 %v742, %v730
    %v983 = vpack.c.b16 %v755, %v743
    %v984 = vpack.c.b16 %v756, %v744
    %v985 = vpack.c.b16 %v757, %v745
    %v986 = vpack.c.b16 %v758, %v746
    %v987 = vpack.c.b16 %v759, %v747
    %v988 = vpack.c.b16 %v760, %v748
    %v989 = vpack.c.b16 %v761, %v749
    %v990 = vpack.c.b16 %v762, %v750
    %v991 = vpack.c.b16 %v763, %v751
    %v992 = vpack.c.b16 %v764, %v752
    %v993 = vpack.c.b16 %v765, %v753
    %v994 = vpack.c.b16 %v766, %v754
    %v995 = vpack.c.b16 %v779, %v767
    %v996 = vpack.c.b16 %v780, %v768
    %v997 = vpack.c.b16 %v781, %v769
    %v998 = vpack.c.b16 %v782, %v770
    %v999 = vpack.c.b16 %v783, %v771
    %v1000 = vpack.c.b16 %v784, %v772
    %v1001 = vpack.c.b16 %v785, %v773
    %v1002 = vpack.c.b16 %v786, %v774
    %v1003 = vpack.c.b16 %v787, %v775
    %v1004 = vpack.c.b16 %v788, %v776
    %v1005 = vpack.c.b16 %v789, %v777
    %v1006 = vpack.c.b16 %v790, %v778
    %v1007 = vpack.c.b16 %v803, %v791
    %v1008 = vpack.c.b16 %v804, %v792
    %v1009 = vpack.c.b16 %v805, %v793
    %v1010 = vpack.c.b16 %v806, %v794
    %v1011 = vpack.c.b16 %v807, %v795
    %v1012 = vpack.c.b16 %v808, %v796
    %v1013 = vpack.c.b16 %v809, %v797
    %v1014 = vpack.c.b16 %v810, %v798
    %v1015 = vpack.c.b16 %v811, %v799
    %v1016 = vpack.c.b16 %v812, %v800
    %v1017 = vpack.c.b16 %v813, %v801
    %v1018 = vpack.c.b16 %v814, %v802
    %v1019 = vpack.c.b16 %v827, %v815
    %v1020 = vpack.c.b16 %v828, %v816
    %v1021 = vpack.c.b16 %v829, %v817
    %v1022 = vpack.c.b16 %v830, %v818
    %v1023 = vpack.c.b16 %v831, %v819
    %v1024 = vpack.c.b16 %v832, %v820
    %v1025 = vpack.c.b16 %v833, %v821
    %v1026 = vpack.c.b16 %v834, %v822
    %v1027 = vpack.c.b16 %v835, %v823
    %v1028 = vpack.c.b16 %v836, %v824
    %v1029 = vpack.c.b16 %v837, %v825
    %v1030 = vpack.c.b16 %v838, %v826
    %1223 = vmatprep.subr.bf16.mxu0 %v924
    %1224 = vmatpush1.bf16.msra.mxu0 %v923
    %1225 = vmatprep.subr.bf16.mxu0 %v912
    %1226 = vmatpush1.bf16.msra.mxu0 %v911
    %1227 = vmatprep.subr.bf16.mxu0 %v900
    %1228 = vmatpush1.bf16.msra.mxu0 %v899
    %1229 = vmatprep.subr.bf16.mxu0 %v888
    %1230 = vmatpush1.bf16.msra.mxu0 %v887
    %1231 = vmatprep.subr.bf16.mxu0 %v876
    %1232 = vmatpush1.bf16.msra.mxu0 %v875
    %1233 = vmatprep.subr.bf16.mxu0 %v864
    %1234 = vmatpush1.bf16.msra.mxu0 %v863
    %1235 = vmatprep.subr.bf16.mxu0 %v852
    %1236 = vmatpush1.bf16.msra.mxu0 %v851
    %1237 = vmatprep.subr.bf16.mxu0 %v840
    %1238 = vmatpush1.bf16.msra.mxu0 %v839
    %1239 = vmatprep.subr.bf16.mxu0 %v1020
    %1240 = vmatpush2.bf16.msra.mxu0 %v1019
    %1241 = vmatprep.subr.bf16.mxu0 %v1008
    %1242 = vmatpush2.bf16.msra.mxu0 %v1007
    %1243 = vmatprep.subr.bf16.mxu0 %v996
    %1244 = vmatpush2.bf16.msra.mxu0 %v995
    %1245 = vmatprep.subr.bf16.mxu0 %v984
    %1246 = vmatpush2.bf16.msra.mxu0 %v983
    %1247 = vmatprep.subr.bf16.mxu0 %v972
    %1248 = vmatpush2.bf16.msra.mxu0 %v971
    %1249 = vmatprep.subr.bf16.mxu0 %v960
    %1250 = vmatpush2.bf16.msra.mxu0 %v959
    %1251 = vmatprep.subr.bf16.mxu0 %v948
    %1252 = vmatpush2.bf16.msra.mxu0 %v947
    %1253 = vmatprep.subr.bf16.mxu0 %v936
    %1254 = vmatpush2.bf16.msra.mxu0 %v935
    %1255 = vmatprep.mubr.bf16.mxu0 %v67
    %1256 = vmatmul.mubr.bf16.gmra.mxu0 %v66
    %v1257 = vpop.f32.mrf.mxu0
    %v1258 = vadd.f32 0.0, %v1257
    %v1259 = vpop.f32.mrf.mxu0
    %v1260 = vadd.f32 0.0, %v1259
    %v1261 = vpop.f32.mrf.mxu0
    %v1262 = vadd.f32 0.0, %v1261
    %v1263 = vpop.f32.mrf.mxu0
    %v1264 = vadd.f32 0.0, %v1263
    %1265 = vdwg.mxu0
    %1266 = vmatprep.subr.bf16.mxu0 %v926
    %1267 = vmatpush1.bf16.msra.mxu0 %v925
    %1268 = vmatprep.subr.bf16.mxu0 %v914
    %1269 = vmatpush1.bf16.msra.mxu0 %v913
    %1270 = vmatprep.subr.bf16.mxu0 %v902
    %1271 = vmatpush1.bf16.msra.mxu0 %v901
    %1272 = vmatprep.subr.bf16.mxu0 %v890
    %1273 = vmatpush1.bf16.msra.mxu0 %v889
    %1274 = vmatprep.subr.bf16.mxu0 %v878
    %1275 = vmatpush1.bf16.msra.mxu0 %v877
    %1276 = vmatprep.subr.bf16.mxu0 %v866
    %1277 = vmatpush1.bf16.msra.mxu0 %v865
    %1278 = vmatprep.subr.bf16.mxu0 %v854
    %1279 = vmatpush1.bf16.msra.mxu0 %v853
    %1280 = vmatprep.subr.bf16.mxu0 %v842
    %1281 = vmatpush1.bf16.msra.mxu0 %v841
    %1282 = vmatprep.subr.bf16.mxu0 %v1022
    %1283 = vmatpush2.bf16.msra.mxu0 %v1021
    %1284 = vmatprep.subr.bf16.mxu0 %v1010
    %1285 = vmatpush2.bf16.msra.mxu0 %v1009
    %1286 = vmatprep.subr.bf16.mxu0 %v998
    %1287 = vmatpush2.bf16.msra.mxu0 %v997
    %1288 = vmatprep.subr.bf16.mxu0 %v986
    %1289 = vmatpush2.bf16.msra.mxu0 %v985
    %1290 = vmatprep.subr.bf16.mxu0 %v974
    %1291 = vmatpush2.bf16.msra.mxu0 %v973
    %1292 = vmatprep.subr.bf16.mxu0 %v962
    %1293 = vmatpush2.bf16.msra.mxu0 %v961
    %1294 = vmatprep.subr.bf16.mxu0 %v950
    %1295 = vmatpush2.bf16.msra.mxu0 %v949
    %1296 = vmatprep.subr.bf16.mxu0 %v938
    %1297 = vmatpush2.bf16.msra.mxu0 %v937
    %1298 = vmatprep.mubr.bf16.mxu0 %v67
    %1299 = vmatmul.mubr.bf16.gmra.mxu0 %v66
    %v1300 = vpop.f32.mrf.mxu0
    %v1301 = vadd.f32 0.0, %v1300
    %v1302 = vpop.f32.mrf.mxu0
    %v1303 = vadd.f32 0.0, %v1302
    %v1304 = vpop.f32.mrf.mxu0
    %v1305 = vadd.f32 0.0, %v1304
    %v1306 = vpop.f32.mrf.mxu0
    %v1307 = vadd.f32 0.0, %v1306
    %1308 = vdwg.mxu0
    %1309 = vmatprep.subr.bf16.mxu0 %v928
    %1310 = vmatpush1.bf16.msra.mxu0 %v927
    %1311 = vmatprep.subr.bf16.mxu0 %v916
    %1312 = vmatpush1.bf16.msra.mxu0 %v915
    %1313 = vmatprep.subr.bf16.mxu0 %v904
    %1314 = vmatpush1.bf16.msra.mxu0 %v903
    %1315 = vmatprep.subr.bf16.mxu0 %v892
    %1316 = vmatpush1.bf16.msra.mxu0 %v891
    %1317 = vmatprep.subr.bf16.mxu0 %v880
    %1318 = vmatpush1.bf16.msra.mxu0 %v879
    %1319 = vmatprep.subr.bf16.mxu0 %v868
    %1320 = vmatpush1.bf16.msra.mxu0 %v867
    %1321 = vmatprep.subr.bf16.mxu0 %v856
    %1322 = vmatpush1.bf16.msra.mxu0 %v855
    %1323 = vmatprep.subr.bf16.mxu0 %v844
    %1324 = vmatpush1.bf16.msra.mxu0 %v843
    %1325 = vmatprep.subr.bf16.mxu0 %v1024
    %1326 = vmatpush2.bf16.msra.mxu0 %v1023
    %1327 = vmatprep.subr.bf16.mxu0 %v1012
    %1328 = vmatpush2.bf16.msra.mxu0 %v1011
    %1329 = vmatprep.subr.bf16.mxu0 %v1000
    %1330 = vmatpush2.bf16.msra.mxu0 %v999
    %1331 = vmatprep.subr.bf16.mxu0 %v988
    %1332 = vmatpush2.bf16.msra.mxu0 %v987
    %1333 = vmatprep.subr.bf16.mxu0 %v976
    %1334 = vmatpush2.bf16.msra.mxu0 %v975
    %1335 = vmatprep.subr.bf16.mxu0 %v964
    %1336 = vmatpush2.bf16.msra.mxu0 %v963
    %1337 = vmatprep.subr.bf16.mxu0 %v952
    %1338 = vmatpush2.bf16.msra.mxu0 %v951
    %1339 = vmatprep.subr.bf16.mxu0 %v940
    %1340 = vmatpush2.bf16.msra.mxu0 %v939
    %1341 = vmatprep.mubr.bf16.mxu0 %v67
    %1342 = vmatmul.mubr.bf16.gmra.mxu0 %v66
    %v1343 = vpop.f32.mrf.mxu0
    %v1344 = vadd.f32 0.0, %v1343
    %v1345 = vpop.f32.mrf.mxu0
    %v1346 = vadd.f32 0.0, %v1345
    %v1347 = vpop.f32.mrf.mxu0
    %v1348 = vadd.f32 0.0, %v1347
    %v1349 = vpop.f32.mrf.mxu0
    %v1350 = vadd.f32 0.0, %v1349
    %1351 = vdwg.mxu0
    %1352 = vmatprep.subr.bf16.mxu0 %v930
    %1353 = vmatpush1.bf16.msra.mxu0 %v929
    %1354 = vmatprep.subr.bf16.mxu0 %v918
    %1355 = vmatpush1.bf16.msra.mxu0 %v917
    %1356 = vmatprep.subr.bf16.mxu0 %v906
    %1357 = vmatpush1.bf16.msra.mxu0 %v905
    %1358 = vmatprep.subr.bf16.mxu0 %v894
    %1359 = vmatpush1.bf16.msra.mxu0 %v893
    %1360 = vmatprep.subr.bf16.mxu0 %v882
    %1361 = vmatpush1.bf16.msra.mxu0 %v881
    %1362 = vmatprep.subr.bf16.mxu0 %v870
    %1363 = vmatpush1.bf16.msra.mxu0 %v869
    %1364 = vmatprep.subr.bf16.mxu0 %v858
    %1365 = vmatpush1.bf16.msra.mxu0 %v857
    %1366 = vmatprep.subr.bf16.mxu0 %v846
    %1367 = vmatpush1.bf16.msra.mxu0 %v845
    %1368 = vmatprep.subr.bf16.mxu0 %v1026
    %1369 = vmatpush2.bf16.msra.mxu0 %v1025
    %1370 = vmatprep.subr.bf16.mxu0 %v1014
    %1371 = vmatpush2.bf16.msra.mxu0 %v1013
    %1372 = vmatprep.subr.bf16.mxu0 %v1002
    %1373 = vmatpush2.bf16.msra.mxu0 %v1001
    %1374 = vmatprep.subr.bf16.mxu0 %v990
    %1375 = vmatpush2.bf16.msra.mxu0 %v989
    %1376 = vmatprep.subr.bf16.mxu0 %v978
    %1377 = vmatpush2.bf16.msra.mxu0 %v977
    %1378 = vmatprep.subr.bf16.mxu0 %v966
    %1379 = vmatpush2.bf16.msra.mxu0 %v965
    %1380 = vmatprep.subr.bf16.mxu0 %v954
    %1381 = vmatpush2.bf16.msra.mxu0 %v953
    %1382 = vmatprep.subr.bf16.mxu0 %v942
    %1383 = vmatpush2.bf16.msra.mxu0 %v941
    %1384 = vmatprep.mubr.bf16.mxu0 %v67
    %1385 = vmatmul.mubr.bf16.gmra.mxu0 %v66
    %v1386 = vpop.f32.mrf.mxu0
    %v1387 = vadd.f32 0.0, %v1386
    %v1388 = vpop.f32.mrf.mxu0
    %v1389 = vadd.f32 0.0, %v1388
    %v1390 = vpop.f32.mrf.mxu0
    %v1391 = vadd.f32 0.0, %v1390
    %v1392 = vpop.f32.mrf.mxu0
    %v1393 = vadd.f32 0.0, %v1392
    %1394 = vdwg.mxu0
    %1395 = vmatprep.subr.bf16.mxu0 %v932
    %1396 = vmatpush1.bf16.msra.mxu0 %v931
    %1397 = vmatprep.subr.bf16.mxu0 %v920
    %1398 = vmatpush1.bf16.msra.mxu0 %v919
    %1399 = vmatprep.subr.bf16.mxu0 %v908
    %1400 = vmatpush1.bf16.msra.mxu0 %v907
    %1401 = vmatprep.subr.bf16.mxu0 %v896
    %1402 = vmatpush1.bf16.msra.mxu0 %v895
    %1403 = vmatprep.subr.bf16.mxu0 %v884
    %1404 = vmatpush1.bf16.msra.mxu0 %v883
    %1405 = vmatprep.subr.bf16.mxu0 %v872
    %1406 = vmatpush1.bf16.msra.mxu0 %v871
    %1407 = vmatprep.subr.bf16.mxu0 %v860
    %1408 = vmatpush1.bf16.msra.mxu0 %v859
    %1409 = vmatprep.subr.bf16.mxu0 %v848
    %1410 = vmatpush1.bf16.msra.mxu0 %v847
    %1411 = vmatprep.subr.bf16.mxu0 %v1028
    %1412 = vmatpush2.bf16.msra.mxu0 %v1027
    %1413 = vmatprep.subr.bf16.mxu0 %v1016
    %1414 = vmatpush2.bf16.msra.mxu0 %v1015
    %1415 = vmatprep.subr.bf16.mxu0 %v1004
    %1416 = vmatpush2.bf16.msra.mxu0 %v1003
    %1417 = vmatprep.subr.bf16.mxu0 %v992
    %1418 = vmatpush2.bf16.msra.mxu0 %v991
    %1419 = vmatprep.subr.bf16.mxu0 %v980
    %1420 = vmatpush2.bf16.msra.mxu0 %v979
    %1421 = vmatprep.subr.bf16.mxu0 %v968
    %1422 = vmatpush2.bf16.msra.mxu0 %v967
    %1423 = vmatprep.subr.bf16.mxu0 %v956
    %1424 = vmatpush2.bf16.msra.mxu0 %v955
    %1425 = vmatprep.subr.bf16.mxu0 %v944
    %1426 = vmatpush2.bf16.msra.mxu0 %v943
    %1427 = vmatprep.mubr.bf16.mxu0 %v67
    %1428 = vmatmul.mubr.bf16.gmra.mxu0 %v66
    %v1429 = vpop.f32.mrf.mxu0
    %v1430 = vadd.f32 0.0, %v1429
    %v1431 = vpop.f32.mrf.mxu0
    %v1432 = vadd.f32 0.0, %v1431
    %v1433 = vpop.f32.mrf.mxu0
    %v1434 = vadd.f32 0.0, %v1433
    %v1435 = vpop.f32.mrf.mxu0
    %v1436 = vadd.f32 0.0, %v1435
    %1437 = vdwg.mxu0
    %1438 = vmatprep.subr.bf16.mxu0 %v934
    %1439 = vmatpush1.bf16.msra.mxu0 %v933
    %1440 = vmatprep.subr.bf16.mxu0 %v922
    %1441 = vmatpush1.bf16.msra.mxu0 %v921
    %1442 = vmatprep.subr.bf16.mxu0 %v910
    %1443 = vmatpush1.bf16.msra.mxu0 %v909
    %1444 = vmatprep.subr.bf16.mxu0 %v898
    %1445 = vmatpush1.bf16.msra.mxu0 %v897
    %1446 = vmatprep.subr.bf16.mxu0 %v886
    %1447 = vmatpush1.bf16.msra.mxu0 %v885
    %1448 = vmatprep.subr.bf16.mxu0 %v874
    %1449 = vmatpush1.bf16.msra.mxu0 %v873
    %1450 = vmatprep.subr.bf16.mxu0 %v862
    %1451 = vmatpush1.bf16.msra.mxu0 %v861
    %1452 = vmatprep.subr.bf16.mxu0 %v850
    %1453 = vmatpush1.bf16.msra.mxu0 %v849
    %1454 = vmatprep.subr.bf16.mxu0 %v1030
    %1455 = vmatpush2.bf16.msra.mxu0 %v1029
    %1456 = vmatprep.subr.bf16.mxu0 %v1018
    %1457 = vmatpush2.bf16.msra.mxu0 %v1017
    %1458 = vmatprep.subr.bf16.mxu0 %v1006
    %1459 = vmatpush2.bf16.msra.mxu0 %v1005
    %1460 = vmatprep.subr.bf16.mxu0 %v994
    %1461 = vmatpush2.bf16.msra.mxu0 %v993
    %1462 = vmatprep.subr.bf16.mxu0 %v982
    %1463 = vmatpush2.bf16.msra.mxu0 %v981
    %1464 = vmatprep.subr.bf16.mxu0 %v970
    %1465 = vmatpush2.bf16.msra.mxu0 %v969
    %1466 = vmatprep.subr.bf16.mxu0 %v958
    %1467 = vmatpush2.bf16.msra.mxu0 %v957
    %1468 = vmatprep.subr.bf16.mxu0 %v946
    %1469 = vmatpush2.bf16.msra.mxu0 %v945
    %1470 = vmatprep.mubr.bf16.mxu0 %v67
    %1471 = vmatmul.mubr.bf16.gmra.mxu0 %v66
    %v1472 = vpop.f32.mrf.mxu0
    %v1473 = vadd.f32 0.0, %v1472
    %v1474 = vpop.f32.mrf.mxu0
    %v1475 = vadd.f32 0.0, %v1474
    %v1476 = vpop.f32.mrf.mxu0
    %v1477 = vadd.f32 0.0, %v1476
    %v1478 = vpop.f32.mrf.mxu0
    %v1479 = vadd.f32 0.0, %v1478
    %1480 = vdwg.mxu0
    %v1481 = vmax.f32 %v1258, %v1303
    %v1482 = vmax.f32 %v1260, %v1344
    %v1483 = vmax.f32 %v1301, %v1346
    %v1484 = vmax.f32 %v1262, %v1307
    %v1485 = vmax.f32 %v1264, %v1348
    %v1486 = vmax.f32 %v1305, %v1350
    %v1487 = vmax.f32 %v1387, %v1432
    %v1488 = vmax.f32 %v1389, %v1473
    %v1489 = vmax.f32 %v1430, %v1475
    %v1490 = vmax.f32 %v1391, %v1436
    %v1491 = vmax.f32 %v1393, %v1477
    %v1492 = vmax.f32 %v1434, %v1479
    %v1493 = vmax.f32 %v1481, %v1487
    %v1494 = vmax.f32 %v1482, %v1488
    %v1495 = vmax.f32 %v1483, %v1489
    %v1496 = vmax.f32 %v1484, %v1490
    %v1497 = vmax.f32 %v1485, %v1491
    %v1498 = vmax.f32 %v1486, %v1492
    %v1499 = vlaneseq
    %v1500 = vshrl.u32 %v1499, 7
    %v1501 = vsub.s32 0, %v1500
    %v1502 = vrot.slane %v68, %v1501
    %v1503 = vlaneseq
    %v1504 = vshrl.u32 %v1503, 7
    %v1505 = vsub.s32 0, %v1504
    %v1506 = vrot.slane %v69, %v1505
    %v1507 = vlaneseq
    %v1508 = vshrl.u32 %v1507, 7
    %v1509 = vsub.s32 0, %v1508
    %v1510 = vrot.slane %v70, %v1509
    %v1511 = vadd.f32 %v1493, %v1502
    %v1512 = vadd.f32 %v1494, %v1506
    %v1513 = vadd.f32 %v1495, %v1510
    %v1514 = vadd.f32 %v1496, %v1502
    %v1515 = vadd.f32 %v1497, %v1506
    %v1516 = vadd.f32 %v1498, %v1510
    %v1517 = vmax.f32 %v1511, 0.0
    %v1518 = vmax.f32 %v1512, 0.0
    %v1519 = vmax.f32 %v1513, 0.0
    %v1520 = vmax.f32 %v1514, 0.0
    %v1521 = vmax.f32 %v1515, 0.0
    %v1522 = vmax.f32 %v1516, 0.0
    %v1523 = vpack.c.bf16 %v1520, %v1517
    %v1524 = vpack.c.bf16 %v1521, %v1518
    %v1525 = vpack.c.bf16 %v1522, %v1519
    %v1526 = vld [vmem:[#allocation4] sm:$0xff]
    %v1527 = vld [vmem:[#allocation4 + $0x8] sm:$0xff]
    %v1528 = vld [vmem:[#allocation4 + $0x10] sm:$0xff]
    %v1529 = vld [vmem:[#allocation4 + $0x18] sm:$0xff]
    %v1530 = vld [vmem:[#allocation4 + $0x20] sm:$0xff]
    %v1531 = vld [vmem:[#allocation4 + $0x28] sm:$0xff]
    %v1532 = vld [vmem:[#allocation4 + $0x30] sm:$0xff]
    %v1533 = vld [vmem:[#allocation4 + $0x38] sm:$0xff]
    %v1534 = vld [vmem:[#allocation4 + $0x40] sm:$0xff]
    %v1535 = vld [vmem:[#allocation4 + $0x48] sm:$0xff]
    %v1536 = vld [vmem:[#allocation4 + $0x50] sm:$0xff]
    %v1537 = vld [vmem:[#allocation4 + $0x58] sm:$0xff]
    %v1538 = vld [vmem:[#allocation4 + $0x60] sm:$0xff]
    %v1539 = vld [vmem:[#allocation4 + $0x68] sm:$0xff]
    %v1540 = vld [vmem:[#allocation4 + $0x70] sm:$0xff]
    %v1541 = vld [vmem:[#allocation4 + $0x78] sm:$0xff]
    %v1542 = vld [vmem:[#allocation4 + $0x80] sm:$0xff]
    %v1543 = vld [vmem:[#allocation4 + $0x88] sm:$0xff]
    %v1544 = vld [vmem:[#allocation4 + $0x90] sm:$0xff]
    %v1545 = vld [vmem:[#allocation4 + $0x98] sm:$0xff]
    %v1546 = vld [vmem:[#allocation4 + $0xa0] sm:$0xff]
    %v1547 = vld [vmem:[#allocation4 + $0xa8] sm:$0xff]
    %v1548 = vld [vmem:[#allocation4 + $0xb0] sm:$0xff]
    %v1549 = vld [vmem:[#allocation4 + $0xb8] sm:$0xff]
    %v1550 = vld [vmem:[#allocation4 + $0xc0] sm:$0xff]
    %v1551 = vld [vmem:[#allocation4 + $0xc8] sm:$0xff]
    %v1552 = vld [vmem:[#allocation4 + $0xd0] sm:$0xff]
    %v1553 = vld [vmem:[#allocation4 + $0xd8] sm:$0xff]
    %v1554 = vld [vmem:[#allocation4 + $0xe0] sm:$0xff]
    %v1555 = vld [vmem:[#allocation4 + $0xe8] sm:$0xff]
    %v1556 = vld [vmem:[#allocation4 + $0xf0] sm:$0xff]
    %v1557 = vld [vmem:[#allocation4 + $0xf8] sm:$0xff]
    %v1558 = vld [vmem:[#allocation4 + $0x100] sm:$0xff]
    %v1559 = vld [vmem:[#allocation4 + $0x108] sm:$0xff]
    %v1560 = vld [vmem:[#allocation4 + $0x110] sm:$0xff]
    %v1561 = vld [vmem:[#allocation4 + $0x118] sm:$0xff]
    %v1562 = vld [vmem:[#allocation4 + $0x120] sm:$0xff]
    %v1563 = vld [vmem:[#allocation4 + $0x128] sm:$0xff]
    %v1564 = vld [vmem:[#allocation4 + $0x130] sm:$0xff]
    %v1565 = vld [vmem:[#allocation4 + $0x138] sm:$0xff]
    %v1566 = vld [vmem:[#allocation4 + $0x140] sm:$0xff]
    %v1567 = vld [vmem:[#allocation4 + $0x148] sm:$0xff]
    %v1568 = vld [vmem:[#allocation4 + $0x150] sm:$0xff]
    %v1569 = vld [vmem:[#allocation4 + $0x158] sm:$0xff]
    %v1570 = vld [vmem:[#allocation4 + $0x160] sm:$0xff]
    %v1571 = vld [vmem:[#allocation4 + $0x168] sm:$0xff]
    %v1572 = vld [vmem:[#allocation4 + $0x170] sm:$0xff]
    %v1573 = vld [vmem:[#allocation4 + $0x178] sm:$0xff]
    %v1574 = vld [vmem:[#allocation4 + $0x180] sm:$0xff]
    %v1575 = vld [vmem:[#allocation4 + $0x188] sm:$0xff]
    %v1576 = vld [vmem:[#allocation4 + $0x190] sm:$0xff]
    %v1577 = vld [vmem:[#allocation4 + $0x198] sm:$0xff]
    %v1578 = vld [vmem:[#allocation4 + $0x1a0] sm:$0xff]
    %v1579 = vld [vmem:[#allocation4 + $0x1a8] sm:$0xff]
    %v1580 = vld [vmem:[#allocation4 + $0x1b0] sm:$0xff]
    %v1581 = vld [vmem:[#allocation4 + $0x1b8] sm:$0xff]
    %v1582 = vld [vmem:[#allocation4 + $0x1c0] sm:$0xff]
    %v1583 = vld [vmem:[#allocation4 + $0x1c8] sm:$0xff]
    %v1584 = vld [vmem:[#allocation4 + $0x1d0] sm:$0xff]
    %v1585 = vld [vmem:[#allocation4 + $0x1d8] sm:$0xff]
    %v1586 = vld [vmem:[#allocation4 + $0x1e0] sm:$0xff]
    %v1587 = vld [vmem:[#allocation4 + $0x1e8] sm:$0xff]
    %v1588 = vld [vmem:[#allocation4 + $0x1f0] sm:$0xff]
    %v1589 = vld [vmem:[#allocation4 + $0x1f8] sm:$0xff]
    %v1590 = vld [vmem:[#allocation4 + $0x200] sm:$0xff]
    %v1591 = vld [vmem:[#allocation4 + $0x208] sm:$0xff]
    %v1592 = vld [vmem:[#allocation4 + $0x210] sm:$0xff]
    %v1593 = vld [vmem:[#allocation4 + $0x218] sm:$0xff]
    %v1594 = vld [vmem:[#allocation4 + $0x220] sm:$0xff]
    %v1595 = vld [vmem:[#allocation4 + $0x228] sm:$0xff]
    %v1596 = vld [vmem:[#allocation4 + $0x230] sm:$0xff]
    %v1597 = vld [vmem:[#allocation4 + $0x238] sm:$0xff]
    %v1598 = vld [vmem:[#allocation4 + $0x240] sm:$0xff]
    %v1599 = vld [vmem:[#allocation4 + $0x248] sm:$0xff]
    %v1600 = vld [vmem:[#allocation4 + $0x250] sm:$0xff]
    %v1601 = vld [vmem:[#allocation4 + $0x258] sm:$0xff]
    %v1602 = vld [vmem:[#allocation4 + $0x260] sm:$0xff]
    %v1603 = vld [vmem:[#allocation4 + $0x268] sm:$0xff]
    %v1604 = vld [vmem:[#allocation4 + $0x270] sm:$0xff]
    %v1605 = vld [vmem:[#allocation4 + $0x278] sm:$0xff]
    %v1606 = vld [vmem:[#allocation4 + $0x280] sm:$0xff]
    %v1607 = vld [vmem:[#allocation4 + $0x288] sm:$0xff]
    %v1608 = vld [vmem:[#allocation4 + $0x290] sm:$0xff]
    %v1609 = vld [vmem:[#allocation4 + $0x298] sm:$0xff]
    %v1610 = vld [vmem:[#allocation4 + $0x2a0] sm:$0xff]
    %v1611 = vld [vmem:[#allocation4 + $0x2a8] sm:$0xff]
    %v1612 = vld [vmem:[#allocation4 + $0x2b0] sm:$0xff]
    %v1613 = vld [vmem:[#allocation4 + $0x2b8] sm:$0xff]
    %v1614 = vld [vmem:[#allocation4 + $0x2c0] sm:$0xff]
    %v1615 = vld [vmem:[#allocation4 + $0x2c8] sm:$0xff]
    %v1616 = vld [vmem:[#allocation4 + $0x2d0] sm:$0xff]
    %v1617 = vld [vmem:[#allocation4 + $0x2d8] sm:$0xff]
    %v1618 = vld [vmem:[#allocation4 + $0x2e0] sm:$0xff]
    %v1619 = vld [vmem:[#allocation4 + $0x2e8] sm:$0xff]
    %v1620 = vld [vmem:[#allocation4 + $0x2f0] sm:$0xff]
    %v1621 = vld [vmem:[#allocation4 + $0x2f8] sm:$0xff]
    %v1718 = vunpack.c.l.b16 %v1526
    %v1719 = vunpack.c.h.b16 %v1526
    %v1720 = vunpack.c.l.b16 %v1527
    %v1721 = vunpack.c.h.b16 %v1527
    %v1722 = vunpack.c.l.b16 %v1528
    %v1723 = vunpack.c.h.b16 %v1528
    %v1724 = vunpack.c.l.b16 %v1529
    %v1725 = vunpack.c.h.b16 %v1529
    %v1726 = vunpack.c.l.b16 %v1530
    %v1727 = vunpack.c.h.b16 %v1530
    %v1728 = vunpack.c.l.b16 %v1531
    %v1729 = vunpack.c.h.b16 %v1531
    %v1730 = vunpack.c.l.b16 %v1532
    %v1731 = vunpack.c.h.b16 %v1532
    %v1732 = vunpack.c.l.b16 %v1533
    %v1733 = vunpack.c.h.b16 %v1533
    %v1734 = vunpack.c.l.b16 %v1534
    %v1735 = vunpack.c.h.b16 %v1534
    %v1736 = vunpack.c.l.b16 %v1535
    %v1737 = vunpack.c.h.b16 %v1535
    %v1738 = vunpack.c.l.b16 %v1536
    %v1739 = vunpack.c.h.b16 %v1536
    %v1740 = vunpack.c.l.b16 %v1537
    %v1741 = vunpack.c.h.b16 %v1537
    %v1742 = vunpack.c.l.b16 %v1538
    %v1743 = vunpack.c.h.b16 %v1538
    %v1744 = vunpack.c.l.b16 %v1539
    %v1745 = vunpack.c.h.b16 %v1539
    %v1746 = vunpack.c.l.b16 %v1540
    %v1747 = vunpack.c.h.b16 %v1540
    %v1748 = vunpack.c.l.b16 %v1541
    %v1749 = vunpack.c.h.b16 %v1541
    %v1750 = vunpack.c.l.b16 %v1542
    %v1751 = vunpack.c.h.b16 %v1542
    %v1752 = vunpack.c.l.b16 %v1543
    %v1753 = vunpack.c.h.b16 %v1543
    %v1754 = vunpack.c.l.b16 %v1544
    %v1755 = vunpack.c.h.b16 %v1544
    %v1756 = vunpack.c.l.b16 %v1545
    %v1757 = vunpack.c.h.b16 %v1545
    %v1758 = vunpack.c.l.b16 %v1546
    %v1759 = vunpack.c.h.b16 %v1546
    %v1760 = vunpack.c.l.b16 %v1547
    %v1761 = vunpack.c.h.b16 %v1547
    %v1762 = vunpack.c.l.b16 %v1548
    %v1763 = vunpack.c.h.b16 %v1548
    %v1764 = vunpack.c.l.b16 %v1549
    %v1765 = vunpack.c.h.b16 %v1549
    %v1766 = vunpack.c.l.b16 %v1550
    %v1767 = vunpack.c.h.b16 %v1550
    %v1768 = vunpack.c.l.b16 %v1551
    %v1769 = vunpack.c.h.b16 %v1551
    %v1770 = vunpack.c.l.b16 %v1552
    %v1771 = vunpack.c.h.b16 %v1552
    %v1772 = vunpack.c.l.b16 %v1553
    %v1773 = vunpack.c.h.b16 %v1553
    %v1774 = vunpack.c.l.b16 %v1554
    %v1775 = vunpack.c.h.b16 %v1554
    %v1776 = vunpack.c.l.b16 %v1555
    %v1777 = vunpack.c.h.b16 %v1555
    %v1778 = vunpack.c.l.b16 %v1556
    %v1779 = vunpack.c.h.b16 %v1556
    %v1780 = vunpack.c.l.b16 %v1557
    %v1781 = vunpack.c.h.b16 %v1557
    %v1782 = vunpack.c.l.b16 %v1558
    %v1783 = vunpack.c.h.b16 %v1558
    %v1784 = vunpack.c.l.b16 %v1559
    %v1785 = vunpack.c.h.b16 %v1559
    %v1786 = vunpack.c.l.b16 %v1560
    %v1787 = vunpack.c.h.b16 %v1560
    %v1788 = vunpack.c.l.b16 %v1561
    %v1789 = vunpack.c.h.b16 %v1561
    %v1790 = vunpack.c.l.b16 %v1562
    %v1791 = vunpack.c.h.b16 %v1562
    %v1792 = vunpack.c.l.b16 %v1563
    %v1793 = vunpack.c.h.b16 %v1563
    %v1794 = vunpack.c.l.b16 %v1564
    %v1795 = vunpack.c.h.b16 %v1564
    %v1796 = vunpack.c.l.b16 %v1565
    %v1797 = vunpack.c.h.b16 %v1565
    %v1798 = vunpack.c.l.b16 %v1566
    %v1799 = vunpack.c.h.b16 %v1566
    %v1800 = vunpack.c.l.b16 %v1567
    %v1801 = vunpack.c.h.b16 %v1567
    %v1802 = vunpack.c.l.b16 %v1568
    %v1803 = vunpack.c.h.b16 %v1568
    %v1804 = vunpack.c.l.b16 %v1569
    %v1805 = vunpack.c.h.b16 %v1569
    %v1806 = vunpack.c.l.b16 %v1570
    %v1807 = vunpack.c.h.b16 %v1570
    %v1808 = vunpack.c.l.b16 %v1571
    %v1809 = vunpack.c.h.b16 %v1571
    %v1810 = vunpack.c.l.b16 %v1572
    %v1811 = vunpack.c.h.b16 %v1572
    %v1812 = vunpack.c.l.b16 %v1573
    %v1813 = vunpack.c.h.b16 %v1573
    %v1814 = vunpack.c.l.b16 %v1574
    %v1815 = vunpack.c.h.b16 %v1574
    %v1816 = vunpack.c.l.b16 %v1575
    %v1817 = vunpack.c.h.b16 %v1575
    %v1818 = vunpack.c.l.b16 %v1576
    %v1819 = vunpack.c.h.b16 %v1576
    %v1820 = vunpack.c.l.b16 %v1577
    %v1821 = vunpack.c.h.b16 %v1577
    %v1822 = vunpack.c.l.b16 %v1578
    %v1823 = vunpack.c.h.b16 %v1578
    %v1824 = vunpack.c.l.b16 %v1579
    %v1825 = vunpack.c.h.b16 %v1579
    %v1826 = vunpack.c.l.b16 %v1580
    %v1827 = vunpack.c.h.b16 %v1580
    %v1828 = vunpack.c.l.b16 %v1581
    %v1829 = vunpack.c.h.b16 %v1581
    %v1830 = vunpack.c.l.b16 %v1582
    %v1831 = vunpack.c.h.b16 %v1582
    %v1832 = vunpack.c.l.b16 %v1583
    %v1833 = vunpack.c.h.b16 %v1583
    %v1834 = vunpack.c.l.b16 %v1584
    %v1835 = vunpack.c.h.b16 %v1584
    %v1836 = vunpack.c.l.b16 %v1585
    %v1837 = vunpack.c.h.b16 %v1585
    %v1838 = vunpack.c.l.b16 %v1586
    %v1839 = vunpack.c.h.b16 %v1586
    %v1840 = vunpack.c.l.b16 %v1587
    %v1841 = vunpack.c.h.b16 %v1587
    %v1842 = vunpack.c.l.b16 %v1588
    %v1843 = vunpack.c.h.b16 %v1588
    %v1844 = vunpack.c.l.b16 %v1589
    %v1845 = vunpack.c.h.b16 %v1589
    %v1846 = vunpack.c.l.b16 %v1590
    %v1847 = vunpack.c.h.b16 %v1590
    %v1848 = vunpack.c.l.b16 %v1591
    %v1849 = vunpack.c.h.b16 %v1591
    %v1850 = vunpack.c.l.b16 %v1592
    %v1851 = vunpack.c.h.b16 %v1592
    %v1852 = vunpack.c.l.b16 %v1593
    %v1853 = vunpack.c.h.b16 %v1593
    %v1854 = vunpack.c.l.b16 %v1594
    %v1855 = vunpack.c.h.b16 %v1594
    %v1856 = vunpack.c.l.b16 %v1595
    %v1857 = vunpack.c.h.b16 %v1595
    %v1858 = vunpack.c.l.b16 %v1596
    %v1859 = vunpack.c.h.b16 %v1596
    %v1860 = vunpack.c.l.b16 %v1597
    %v1861 = vunpack.c.h.b16 %v1597
    %v1862 = vunpack.c.l.b16 %v1598
    %v1863 = vunpack.c.h.b16 %v1598
    %v1864 = vunpack.c.l.b16 %v1599
    %v1865 = vunpack.c.h.b16 %v1599
    %v1866 = vunpack.c.l.b16 %v1600
    %v1867 = vunpack.c.h.b16 %v1600
    %v1868 = vunpack.c.l.b16 %v1601
    %v1869 = vunpack.c.h.b16 %v1601
    %v1870 = vunpack.c.l.b16 %v1602
    %v1871 = vunpack.c.h.b16 %v1602
    %v1872 = vunpack.c.l.b16 %v1603
    %v1873 = vunpack.c.h.b16 %v1603
    %v1874 = vunpack.c.l.b16 %v1604
    %v1875 = vunpack.c.h.b16 %v1604
    %v1876 = vunpack.c.l.b16 %v1605
    %v1877 = vunpack.c.h.b16 %v1605
    %v1878 = vunpack.c.l.b16 %v1606
    %v1879 = vunpack.c.h.b16 %v1606
    %v1880 = vunpack.c.l.b16 %v1607
    %v1881 = vunpack.c.h.b16 %v1607
    %v1882 = vunpack.c.l.b16 %v1608
    %v1883 = vunpack.c.h.b16 %v1608
    %v1884 = vunpack.c.l.b16 %v1609
    %v1885 = vunpack.c.h.b16 %v1609
    %v1886 = vunpack.c.l.b16 %v1610
    %v1887 = vunpack.c.h.b16 %v1610
    %v1888 = vunpack.c.l.b16 %v1611
    %v1889 = vunpack.c.h.b16 %v1611
    %v1890 = vunpack.c.l.b16 %v1612
    %v1891 = vunpack.c.h.b16 %v1612
    %v1892 = vunpack.c.l.b16 %v1613
    %v1893 = vunpack.c.h.b16 %v1613
    %v1894 = vunpack.c.l.b16 %v1614
    %v1895 = vunpack.c.h.b16 %v1614
    %v1896 = vunpack.c.l.b16 %v1615
    %v1897 = vunpack.c.h.b16 %v1615
    %v1898 = vunpack.c.l.b16 %v1616
    %v1899 = vunpack.c.h.b16 %v1616
    %v1900 = vunpack.c.l.b16 %v1617
    %v1901 = vunpack.c.h.b16 %v1617
    %v1902 = vunpack.c.l.b16 %v1618
    %v1903 = vunpack.c.h.b16 %v1618
    %v1904 = vunpack.c.l.b16 %v1619
    %v1905 = vunpack.c.h.b16 %v1619
    %v1906 = vunpack.c.l.b16 %v1620
    %v1907 = vunpack.c.h.b16 %v1620
    %v1908 = vunpack.c.l.b16 %v1621
    %v1909 = vunpack.c.h.b16 %v1621
    %v1910 = vpack.c.b16 %v1722, %v1718
    %v1911 = vpack.c.b16 %v1723, %v1719
    %v1912 = vpack.c.b16 %v1724, %v1720
    %v1913 = vpack.c.b16 %v1725, %v1721
    %v1914 = vpack.c.b16 %v1730, %v1726
    %v1915 = vpack.c.b16 %v1731, %v1727
    %v1916 = vpack.c.b16 %v1732, %v1728
    %v1917 = vpack.c.b16 %v1733, %v1729
    %v1918 = vpack.c.b16 %v1738, %v1734
    %v1919 = vpack.c.b16 %v1739, %v1735
    %v1920 = vpack.c.b16 %v1740, %v1736
    %v1921 = vpack.c.b16 %v1741, %v1737
    %v1922 = vpack.c.b16 %v1746, %v1742
    %v1923 = vpack.c.b16 %v1747, %v1743
    %v1924 = vpack.c.b16 %v1748, %v1744
    %v1925 = vpack.c.b16 %v1749, %v1745
    %v1926 = vpack.c.b16 %v1754, %v1750
    %v1927 = vpack.c.b16 %v1755, %v1751
    %v1928 = vpack.c.b16 %v1756, %v1752
    %v1929 = vpack.c.b16 %v1757, %v1753
    %v1930 = vpack.c.b16 %v1762, %v1758
    %v1931 = vpack.c.b16 %v1763, %v1759
    %v1932 = vpack.c.b16 %v1764, %v1760
    %v1933 = vpack.c.b16 %v1765, %v1761
    %v1934 = vpack.c.b16 %v1770, %v1766
    %v1935 = vpack.c.b16 %v1771, %v1767
    %v1936 = vpack.c.b16 %v1772, %v1768
    %v1937 = vpack.c.b16 %v1773, %v1769
    %v1938 = vpack.c.b16 %v1778, %v1774
    %v1939 = vpack.c.b16 %v1779, %v1775
    %v1940 = vpack.c.b16 %v1780, %v1776
    %v1941 = vpack.c.b16 %v1781, %v1777
    %v1942 = vpack.c.b16 %v1786, %v1782
    %v1943 = vpack.c.b16 %v1787, %v1783
    %v1944 = vpack.c.b16 %v1788, %v1784
    %v1945 = vpack.c.b16 %v1789, %v1785
    %v1946 = vpack.c.b16 %v1794, %v1790
    %v1947 = vpack.c.b16 %v1795, %v1791
    %v1948 = vpack.c.b16 %v1796, %v1792
    %v1949 = vpack.c.b16 %v1797, %v1793
    %v1950 = vpack.c.b16 %v1802, %v1798
    %v1951 = vpack.c.b16 %v1803, %v1799
    %v1952 = vpack.c.b16 %v1804, %v1800
    %v1953 = vpack.c.b16 %v1805, %v1801
    %v1954 = vpack.c.b16 %v1810, %v1806
    %v1955 = vpack.c.b16 %v1811, %v1807
    %v1956 = vpack.c.b16 %v1812, %v1808
    %v1957 = vpack.c.b16 %v1813, %v1809
    %v1958 = vpack.c.b16 %v1818, %v1814
    %v1959 = vpack.c.b16 %v1819, %v1815
    %v1960 = vpack.c.b16 %v1820, %v1816
    %v1961 = vpack.c.b16 %v1821, %v1817
    %v1962 = vpack.c.b16 %v1826, %v1822
    %v1963 = vpack.c.b16 %v1827, %v1823
    %v1964 = vpack.c.b16 %v1828, %v1824
    %v1965 = vpack.c.b16 %v1829, %v1825
    %v1966 = vpack.c.b16 %v1834, %v1830
    %v1967 = vpack.c.b16 %v1835, %v1831
    %v1968 = vpack.c.b16 %v1836, %v1832
    %v1969 = vpack.c.b16 %v1837, %v1833
    %v1970 = vpack.c.b16 %v1842, %v1838
    %v1971 = vpack.c.b16 %v1843, %v1839
    %v1972 = vpack.c.b16 %v1844, %v1840
    %v1973 = vpack.c.b16 %v1845, %v1841
    %v1974 = vpack.c.b16 %v1850, %v1846
    %v1975 = vpack.c.b16 %v1851, %v1847
    %v1976 = vpack.c.b16 %v1852, %v1848
    %v1977 = vpack.c.b16 %v1853, %v1849
    %v1978 = vpack.c.b16 %v1858, %v1854
    %v1979 = vpack.c.b16 %v1859, %v1855
    %v1980 = vpack.c.b16 %v1860, %v1856
    %v1981 = vpack.c.b16 %v1861, %v1857
    %v1982 = vpack.c.b16 %v1866, %v1862
    %v1983 = vpack.c.b16 %v1867, %v1863
    %v1984 = vpack.c.b16 %v1868, %v1864
    %v1985 = vpack.c.b16 %v1869, %v1865
    %v1986 = vpack.c.b16 %v1874, %v1870
    %v1987 = vpack.c.b16 %v1875, %v1871
    %v1988 = vpack.c.b16 %v1876, %v1872
    %v1989 = vpack.c.b16 %v1877, %v1873
    %v1990 = vpack.c.b16 %v1882, %v1878
    %v1991 = vpack.c.b16 %v1883, %v1879
    %v1992 = vpack.c.b16 %v1884, %v1880
    %v1993 = vpack.c.b16 %v1885, %v1881
    %v1994 = vpack.c.b16 %v1890, %v1886
    %v1995 = vpack.c.b16 %v1891, %v1887
    %v1996 = vpack.c.b16 %v1892, %v1888
    %v1997 = vpack.c.b16 %v1893, %v1889
    %v1998 = vpack.c.b16 %v1898, %v1894
    %v1999 = vpack.c.b16 %v1899, %v1895
    %v2000 = vpack.c.b16 %v1900, %v1896
    %v2001 = vpack.c.b16 %v1901, %v1897
    %v2002 = vpack.c.b16 %v1906, %v1902
    %v2003 = vpack.c.b16 %v1907, %v1903
    %v2004 = vpack.c.b16 %v1908, %v1904
    %v2005 = vpack.c.b16 %v1909, %v1905
    %2102 = vmatprep.subr.bf16.mxu0 %v1939
    %2103 = vmatpush1.bf16.msra.mxu0 %v1938
    %2104 = vmatprep.subr.bf16.mxu0 %v1935
    %2105 = vmatpush1.bf16.msra.mxu0 %v1934
    %2106 = vmatprep.subr.bf16.mxu0 %v1931
    %2107 = vmatpush1.bf16.msra.mxu0 %v1930
    %2108 = vmatprep.subr.bf16.mxu0 %v1927
    %2109 = vmatpush1.bf16.msra.mxu0 %v1926
    %2110 = vmatprep.subr.bf16.mxu0 %v1923
    %2111 = vmatpush1.bf16.msra.mxu0 %v1922
    %2112 = vmatprep.subr.bf16.mxu0 %v1919
    %2113 = vmatpush1.bf16.msra.mxu0 %v1918
    %2114 = vmatprep.subr.bf16.mxu0 %v1915
    %2115 = vmatpush1.bf16.msra.mxu0 %v1914
    %2116 = vmatprep.subr.bf16.mxu0 %v1911
    %2117 = vmatpush1.bf16.msra.mxu0 %v1910
    %2118 = vmatprep.subr.bf16.mxu0 %v1971
    %2119 = vmatpush2.bf16.msra.mxu0 %v1970
    %2120 = vmatprep.subr.bf16.mxu0 %v1967
    %2121 = vmatpush2.bf16.msra.mxu0 %v1966
    %2122 = vmatprep.subr.bf16.mxu0 %v1963
    %2123 = vmatpush2.bf16.msra.mxu0 %v1962
    %2124 = vmatprep.subr.bf16.mxu0 %v1959
    %2125 = vmatpush2.bf16.msra.mxu0 %v1958
    %2126 = vmatprep.subr.bf16.mxu0 %v1955
    %2127 = vmatpush2.bf16.msra.mxu0 %v1954
    %2128 = vmatprep.subr.bf16.mxu0 %v1951
    %2129 = vmatpush2.bf16.msra.mxu0 %v1950
    %2130 = vmatprep.subr.bf16.mxu0 %v1947
    %2131 = vmatpush2.bf16.msra.mxu0 %v1946
    %2132 = vmatprep.subr.bf16.mxu0 %v1943
    %2133 = vmatpush2.bf16.msra.mxu0 %v1942
    %2134 = vmatprep.mubr.bf16.mxu0 %v1524
    %2135 = vmatmul.mubr.bf16.gmra.mxu0 %v1523
    %v2136 = vpop.f32.mrf.mxu0
    %v2137 = vadd.f32 0.0, %v2136
    %v2138 = vpop.f32.mrf.mxu0
    %v2139 = vadd.f32 0.0, %v2138
    %v2140 = vpop.f32.mrf.mxu0
    %v2141 = vadd.f32 0.0, %v2140
    %v2142 = vpop.f32.mrf.mxu0
    %v2143 = vadd.f32 0.0, %v2142
    %2144 = vdwg.mxu0
    %2145 = vmatprep.subr.bf16.mxu0 %v2003
    %2146 = vmatpush1.bf16.msra.mxu0 %v2002
    %2147 = vmatprep.subr.bf16.mxu0 %v1999
    %2148 = vmatpush1.bf16.msra.mxu0 %v1998
    %2149 = vmatprep.subr.bf16.mxu0 %v1995
    %2150 = vmatpush1.bf16.msra.mxu0 %v1994
    %2151 = vmatprep.subr.bf16.mxu0 %v1991
    %2152 = vmatpush1.bf16.msra.mxu0 %v1990
    %2153 = vmatprep.subr.bf16.mxu0 %v1987
    %2154 = vmatpush1.bf16.msra.mxu0 %v1986
    %2155 = vmatprep.subr.bf16.mxu0 %v1983
    %2156 = vmatpush1.bf16.msra.mxu0 %v1982
    %2157 = vmatprep.subr.bf16.mxu0 %v1979
    %2158 = vmatpush1.bf16.msra.mxu0 %v1978
    %2159 = vmatprep.subr.bf16.mxu0 %v1975
    %2160 = vmatpush1.bf16.msra.mxu0 %v1974
    %2161 = vmatprep.subr.bf16.mxu0 0
    %2162 = vmatpush2.bf16.msra.mxu0 0
    %2163 = vmatprep.subr.bf16.mxu0 0
    %2164 = vmatpush2.bf16.msra.mxu0 0
    %2165 = vmatprep.subr.bf16.mxu0 0
    %2166 = vmatpush2.bf16.msra.mxu0 0
    %2167 = vmatprep.subr.bf16.mxu0 0
    %2168 = vmatpush2.bf16.msra.mxu0 0
    %2169 = vmatprep.subr.bf16.mxu0 0
    %2170 = vmatpush2.bf16.msra.mxu0 0
    %2171 = vmatprep.subr.bf16.mxu0 0
    %2172 = vmatpush2.bf16.msra.mxu0 0
    %2173 = vmatprep.subr.bf16.mxu0 0
    %2174 = vmatpush2.bf16.msra.mxu0 0
    %2175 = vmatprep.subr.bf16.mxu0 0
    %2176 = vmatpush2.bf16.msra.mxu0 0
    %2177 = vmatprep.mubr.bf16.mxu0 0
    %2178 = vmatmul.mubr.bf16.gmra.mxu0 %v1525
    %v2179 = vpop.f32.mrf.mxu0
    %v2180 = vadd.f32 %v2137, %v2179
    %v2181 = vpop.f32.mrf.mxu0
    %v2182 = vadd.f32 %v2139, %v2181
    %v2183 = vpop.f32.mrf.mxu0
    %v2184 = vadd.f32 %v2141, %v2183
    %v2185 = vpop.f32.mrf.mxu0
    %v2186 = vadd.f32 %v2143, %v2185
    %2187 = vdwg.mxu0
    %2188 = vmatprep.subr.bf16.mxu0 %v1941
    %2189 = vmatpush1.bf16.msra.mxu0 %v1940
    %2190 = vmatprep.subr.bf16.mxu0 %v1937
    %2191 = vmatpush1.bf16.msra.mxu0 %v1936
    %2192 = vmatprep.subr.bf16.mxu0 %v1933
    %2193 = vmatpush1.bf16.msra.mxu0 %v1932
    %2194 = vmatprep.subr.bf16.mxu0 %v1929
    %2195 = vmatpush1.bf16.msra.mxu0 %v1928
    %2196 = vmatprep.subr.bf16.mxu0 %v1925
    %2197 = vmatpush1.bf16.msra.mxu0 %v1924
    %2198 = vmatprep.subr.bf16.mxu0 %v1921
    %2199 = vmatpush1.bf16.msra.mxu0 %v1920
    %2200 = vmatprep.subr.bf16.mxu0 %v1917
    %2201 = vmatpush1.bf16.msra.mxu0 %v1916
    %2202 = vmatprep.subr.bf16.mxu0 %v1913
    %2203 = vmatpush1.bf16.msra.mxu0 %v1912
    %2204 = vmatprep.subr.bf16.mxu0 %v1973
    %2205 = vmatpush2.bf16.msra.mxu0 %v1972
    %2206 = vmatprep.subr.bf16.mxu0 %v1969
    %2207 = vmatpush2.bf16.msra.mxu0 %v1968
    %2208 = vmatprep.subr.bf16.mxu0 %v1965
    %2209 = vmatpush2.bf16.msra.mxu0 %v1964
    %2210 = vmatprep.subr.bf16.mxu0 %v1961
    %2211 = vmatpush2.bf16.msra.mxu0 %v1960
    %2212 = vmatprep.subr.bf16.mxu0 %v1957
    %2213 = vmatpush2.bf16.msra.mxu0 %v1956
    %2214 = vmatprep.subr.bf16.mxu0 %v1953
    %2215 = vmatpush2.bf16.msra.mxu0 %v1952
    %2216 = vmatprep.subr.bf16.mxu0 %v1949
    %2217 = vmatpush2.bf16.msra.mxu0 %v1948
    %2218 = vmatprep.subr.bf16.mxu0 %v1945
    %2219 = vmatpush2.bf16.msra.mxu0 %v1944
    %2220 = vmatprep.mubr.bf16.mxu0 %v1524
    %2221 = vmatmul.mubr.bf16.gmra.mxu0 %v1523
    %v2222 = vpop.f32.mrf.mxu0
    %v2223 = vadd.f32 0.0, %v2222
    %v2224 = vpop.f32.mrf.mxu0
    %v2225 = vadd.f32 0.0, %v2224
    %v2226 = vpop.f32.mrf.mxu0
    %v2227 = vadd.f32 0.0, %v2226
    %v2228 = vpop.f32.mrf.mxu0
    %v2229 = vadd.f32 0.0, %v2228
    %2230 = vdwg.mxu0
    %2231 = vmatprep.subr.bf16.mxu0 %v2005
    %2232 = vmatpush1.bf16.msra.mxu0 %v2004
    %2233 = vmatprep.subr.bf16.mxu0 %v2001
    %2234 = vmatpush1.bf16.msra.mxu0 %v2000
    %2235 = vmatprep.subr.bf16.mxu0 %v1997
    %2236 = vmatpush1.bf16.msra.mxu0 %v1996
    %2237 = vmatprep.subr.bf16.mxu0 %v1993
    %2238 = vmatpush1.bf16.msra.mxu0 %v1992
    %2239 = vmatprep.subr.bf16.mxu0 %v1989
    %2240 = vmatpush1.bf16.msra.mxu0 %v1988
    %2241 = vmatprep.subr.bf16.mxu0 %v1985
    %2242 = vmatpush1.bf16.msra.mxu0 %v1984
    %2243 = vmatprep.subr.bf16.mxu0 %v1981
    %2244 = vmatpush1.bf16.msra.mxu0 %v1980
    %2245 = vmatprep.subr.bf16.mxu0 %v1977
    %2246 = vmatpush1.bf16.msra.mxu0 %v1976
    %2247 = vmatprep.subr.bf16.mxu0 0
    %2248 = vmatpush2.bf16.msra.mxu0 0
    %2249 = vmatprep.subr.bf16.mxu0 0
    %2250 = vmatpush2.bf16.msra.mxu0 0
    %2251 = vmatprep.subr.bf16.mxu0 0
    %2252 = vmatpush2.bf16.msra.mxu0 0
    %2253 = vmatprep.subr.bf16.mxu0 0
    %2254 = vmatpush2.bf16.msra.mxu0 0
    %2255 = vmatprep.subr.bf16.mxu0 0
    %2256 = vmatpush2.bf16.msra.mxu0 0
    %2257 = vmatprep.subr.bf16.mxu0 0
    %2258 = vmatpush2.bf16.msra.mxu0 0
    %2259 = vmatprep.subr.bf16.mxu0 0
    %2260 = vmatpush2.bf16.msra.mxu0 0
    %2261 = vmatprep.subr.bf16.mxu0 0
    %2262 = vmatpush2.bf16.msra.mxu0 0
    %2263 = vmatprep.mubr.bf16.mxu0 0
    %2264 = vmatmul.mubr.bf16.gmra.mxu0 %v1525
    %v2265 = vpop.f32.mrf.mxu0
    %v2266 = vadd.f32 %v2223, %v2265
    %v2267 = vpop.f32.mrf.mxu0
    %v2268 = vadd.f32 %v2225, %v2267
    %v2269 = vpop.f32.mrf.mxu0
    %v2270 = vadd.f32 %v2227, %v2269
    %v2271 = vpop.f32.mrf.mxu0
    %v2272 = vadd.f32 %v2229, %v2271
    %2273 = vdwg.mxu0
    %v2274 = vmax.f32 %v2180, %v2182
    %v2275 = vmax.f32 %v2184, %v2186
    %v2276 = vmax.f32 %v2266, %v2268
    %v2277 = vmax.f32 %v2270, %v2272
    %v2278 = vmax.f32 %v2274, %v2276
    %v2279 = vmax.f32 %v2275, %v2277
    %v2280 = vlaneseq
    %v2281 = vshrl.u32 %v2280, 7
    %v2282 = vsub.s32 1, %v2281
    %v2283 = vrot.slane %v68, %v2282
    %v2284 = vadd.f32 %v2278, %v2283
    %v2285 = vadd.f32 %v2279, %v2283
    %v2286 = vmax.f32 %v2284, 0.0
    %v2287 = vmax.f32 %v2285, 0.0
    %v2288 = vpack.c.bf16 %v2287, %v2286
    %v2289 = vld [vmem:[#allocation6] sm:$0xf]
    %v2290 = vld [vmem:[#allocation6 + $0x4] sm:$0xf]
    %v2291 = vld [vmem:[#allocation6 + $0x8] sm:$0xf]
    %v2292 = vld [vmem:[#allocation6 + $0xc] sm:$0xf]
    %v2293 = vld [vmem:[#allocation6 + $0x10] sm:$0xf]
    %v2294 = vld [vmem:[#allocation6 + $0x14] sm:$0xf]
    %v2295 = vld [vmem:[#allocation6 + $0x18] sm:$0xf]
    %v2296 = vld [vmem:[#allocation6 + $0x1c] sm:$0xf]
    %v2297 = vld [vmem:[#allocation6 + $0x20] sm:$0xf]
    %v2298 = vld [vmem:[#allocation6 + $0x24] sm:$0xf]
    %v2299 = vld [vmem:[#allocation6 + $0x28] sm:$0xf]
    %v2300 = vld [vmem:[#allocation6 + $0x2c] sm:$0xf]
    %v2301 = vld [vmem:[#allocation6 + $0x30] sm:$0xf]
    %v2302 = vld [vmem:[#allocation6 + $0x34] sm:$0xf]
    %v2303 = vld [vmem:[#allocation6 + $0x38] sm:$0xf]
    %v2304 = vld [vmem:[#allocation6 + $0x3c] sm:$0xf]
    %v2305 = vlaneseq
    %v2306 = vshrl.u32 %v2305, 7
    %v2307 = vsub.s32 2, %v2306
    %v2308 = vrot.slane %v68, %v2307
    %v2325 = vunpack.c.l.b16 %v2289
    %v2326 = vunpack.c.l.b16 %v2290
    %v2327 = vunpack.c.l.b16 %v2291
    %v2328 = vunpack.c.l.b16 %v2292
    %v2329 = vunpack.c.l.b16 %v2293
    %v2330 = vunpack.c.l.b16 %v2294
    %v2331 = vunpack.c.l.b16 %v2295
    %v2332 = vunpack.c.l.b16 %v2296
    %v2333 = vunpack.c.l.b16 %v2297
    %v2334 = vunpack.c.l.b16 %v2298
    %v2335 = vunpack.c.l.b16 %v2299
    %v2336 = vunpack.c.l.b16 %v2300
    %v2337 = vunpack.c.l.b16 %v2301
    %v2338 = vunpack.c.l.b16 %v2302
    %v2339 = vunpack.c.l.b16 %v2303
    %v2340 = vunpack.c.l.b16 %v2304
    %v2341 = vpack.c.b16 %v2326, %v2325
    %v2342 = vpack.c.b16 %v2328, %v2327
    %v2343 = vpack.c.b16 %v2330, %v2329
    %v2344 = vpack.c.b16 %v2332, %v2331
    %v2345 = vpack.c.b16 %v2334, %v2333
    %v2346 = vpack.c.b16 %v2336, %v2335
    %v2347 = vpack.c.b16 %v2338, %v2337
    %v2348 = vpack.c.b16 %v2340, %v2339
    %2357 = vmatprep.subr.bf16.mxu0 0
    %2358 = vmatpush1.bf16.msra.mxu0 %v2348
    %2359 = vmatprep.subr.bf16.mxu0 0
    %2360 = vmatpush1.bf16.msra.mxu0 %v2347
    %2361 = vmatprep.subr.bf16.mxu0 0
    %2362 = vmatpush1.bf16.msra.mxu0 %v2346
    %2363 = vmatprep.subr.bf16.mxu0 0
    %2364 = vmatpush1.bf16.msra.mxu0 %v2345
    %2365 = vmatprep.subr.bf16.mxu0 0
    %2366 = vmatpush1.bf16.msra.mxu0 %v2344
    %2367 = vmatprep.subr.bf16.mxu0 0
    %2368 = vmatpush1.bf16.msra.mxu0 %v2343
    %2369 = vmatprep.subr.bf16.mxu0 0
    %2370 = vmatpush1.bf16.msra.mxu0 %v2342
    %2371 = vmatprep.subr.bf16.mxu0 0
    %2372 = vmatpush1.bf16.msra.mxu0 %v2341
    %2373 = vmatprep.subr.bf16.mxu0 0
    %2374 = vmatpush2.bf16.msra.mxu0 0
    %2375 = vmatprep.subr.bf16.mxu0 0
    %2376 = vmatpush2.bf16.msra.mxu0 0
    %2377 = vmatprep.subr.bf16.mxu0 0
    %2378 = vmatpush2.bf16.msra.mxu0 0
    %2379 = vmatprep.subr.bf16.mxu0 0
    %2380 = vmatpush2.bf16.msra.mxu0 0
    %2381 = vmatprep.subr.bf16.mxu0 0
    %2382 = vmatpush2.bf16.msra.mxu0 0
    %2383 = vmatprep.subr.bf16.mxu0 0
    %2384 = vmatpush2.bf16.msra.mxu0 0
    %2385 = vmatprep.subr.bf16.mxu0 0
    %2386 = vmatpush2.bf16.msra.mxu0 0
    %2387 = vmatprep.subr.bf16.mxu0 0
    %2388 = vmatpush2.bf16.msra.mxu0 0
    %2389 = vmatprep.mubr.bf16.mxu0 0
    %2390 = vmatmul.mubr.bf16.gmra.mxu0 %v2288
    %v2391 = vpop.f32.mrf.mxu0
    %v2392 = vadd.f32 %v2308, %v2391
    %v2393 = vpop.f32.mrf.mxu0
    %v2394 = vpop.f32.mrf.mxu0
    %v2395 = vadd.f32 %v2308, %v2394
    %v2396 = vpop.f32.mrf.mxu0
    %2397 = vdwg.mxu0
    %v2398 = vmax.f32 %v2392, 0.0
    %v2399 = vmax.f32 %v2395, 0.0
    %v2400 = vpack.c.bf16 %v2399, %v2398
    %s2401 = scalar_lea.vmem [#allocation6], 64
    %v2402 = vld [vmem:[%s2401] sm:$0xf]
    %v2403 = vld [vmem:[%s2401 + $0x4] sm:$0xf]
    %v2404 = vld [vmem:[%s2401 + $0x8] sm:$0xf]
    %v2405 = vld [vmem:[%s2401 + $0xc] sm:$0xf]
    %v2406 = vld [vmem:[%s2401 + $0x10] sm:$0xf]
    %v2407 = vld [vmem:[%s2401 + $0x14] sm:$0xf]
    %v2408 = vld [vmem:[%s2401 + $0x18] sm:$0xf]
    %v2409 = vld [vmem:[%s2401 + $0x1c] sm:$0xf]
    %v2410 = vld [vmem:[%s2401 + $0x20] sm:$0xf]
    %v2411 = vld [vmem:[%s2401 + $0x24] sm:$0xf]
    %v2412 = vld [vmem:[%s2401 + $0x28] sm:$0xf]
    %v2413 = vld [vmem:[%s2401 + $0x2c] sm:$0xf]
    %v2414 = vld [vmem:[%s2401 + $0x30] sm:$0xf]
    %v2415 = vld [vmem:[%s2401 + $0x34] sm:$0xf]
    %v2416 = vld [vmem:[%s2401 + $0x38] sm:$0xf]
    %v2417 = vld [vmem:[%s2401 + $0x3c] sm:$0xf]
    %v2418 = vlaneseq
    %v2419 = vshrl.u32 %v2418, 7
    %v2420 = vsub.s32 3, %v2419
    %v2421 = vrot.slane %v68, %v2420
    %v2438 = vunpack.c.l.b16 %v2402
    %v2439 = vunpack.c.l.b16 %v2403
    %v2440 = vunpack.c.l.b16 %v2404
    %v2441 = vunpack.c.l.b16 %v2405
    %v2442 = vunpack.c.l.b16 %v2406
    %v2443 = vunpack.c.l.b16 %v2407
    %v2444 = vunpack.c.l.b16 %v2408
    %v2445 = vunpack.c.l.b16 %v2409
    %v2446 = vunpack.c.l.b16 %v2410
    %v2447 = vunpack.c.l.b16 %v2411
    %v2448 = vunpack.c.l.b16 %v2412
    %v2449 = vunpack.c.l.b16 %v2413
    %v2450 = vunpack.c.l.b16 %v2414
    %v2451 = vunpack.c.l.b16 %v2415
    %v2452 = vunpack.c.l.b16 %v2416
    %v2453 = vunpack.c.l.b16 %v2417
    %v2454 = vpack.c.b16 %v2439, %v2438
    %v2455 = vpack.c.b16 %v2441, %v2440
    %v2456 = vpack.c.b16 %v2443, %v2442
    %v2457 = vpack.c.b16 %v2445, %v2444
    %v2458 = vpack.c.b16 %v2447, %v2446
    %v2459 = vpack.c.b16 %v2449, %v2448
    %v2460 = vpack.c.b16 %v2451, %v2450
    %v2461 = vpack.c.b16 %v2453, %v2452
    %2470 = vmatprep.subr.bf16.mxu0 0
    %2471 = vmatpush1.bf16.msra.mxu0 %v2461
    %2472 = vmatprep.subr.bf16.mxu0 0
    %2473 = vmatpush1.bf16.msra.mxu0 %v2460
    %2474 = vmatprep.subr.bf16.mxu0 0
    %2475 = vmatpush1.bf16.msra.mxu0 %v2459
    %2476 = vmatprep.subr.bf16.mxu0 0
    %2477 = vmatpush1.bf16.msra.mxu0 %v2458
    %2478 = vmatprep.subr.bf16.mxu0 0
    %2479 = vmatpush1.bf16.msra.mxu0 %v2457
    %2480 = vmatprep.subr.bf16.mxu0 0
    %2481 = vmatpush1.bf16.msra.mxu0 %v2456
    %2482 = vmatprep.subr.bf16.mxu0 0
    %2483 = vmatpush1.bf16.msra.mxu0 %v2455
    %2484 = vmatprep.subr.bf16.mxu0 0
    %2485 = vmatpush1.bf16.msra.mxu0 %v2454
    %2486 = vmatprep.subr.bf16.mxu0 0
    %2487 = vmatpush2.bf16.msra.mxu0 0
    %2488 = vmatprep.subr.bf16.mxu0 0
    %2489 = vmatpush2.bf16.msra.mxu0 0
    %2490 = vmatprep.subr.bf16.mxu0 0
    %2491 = vmatpush2.bf16.msra.mxu0 0
    %2492 = vmatprep.subr.bf16.mxu0 0
    %2493 = vmatpush2.bf16.msra.mxu0 0
    %2494 = vmatprep.subr.bf16.mxu0 0
    %2495 = vmatpush2.bf16.msra.mxu0 0
    %2496 = vmatprep.subr.bf16.mxu0 0
    %2497 = vmatpush2.bf16.msra.mxu0 0
    %2498 = vmatprep.subr.bf16.mxu0 0
    %2499 = vmatpush2.bf16.msra.mxu0 0
    %2500 = vmatprep.subr.bf16.mxu0 0
    %2501 = vmatpush2.bf16.msra.mxu0 0
    %2502 = vmatprep.mubr.bf16.mxu0 0
    %2503 = vmatmul.mubr.bf16.gmra.mxu0 %v2400
    %v2504 = vpop.f32.mrf.mxu0
    %v2505 = vadd.f32 %v2421, %v2504
    %v2506 = vpop.f32.mrf.mxu0
    %v2507 = vpop.f32.mrf.mxu0
    %v2508 = vadd.f32 %v2421, %v2507
    %v2509 = vpop.f32.mrf.mxu0
    %2510 = vdwg.mxu0
    %v2511 = vmax.f32 %v2505, 0.0
    %v2512 = vmax.f32 %v2508, 0.0
    %v2513 = vpack.c.bf16 %v2512, %v2511
    %s2514 = scalar_lea.vmem [#allocation6], 128
    %v2515 = vld [vmem:[%s2514] sm:$0xf]
    %v2516 = vld [vmem:[%s2514 + $0x4] sm:$0xf]
    %v2517 = vld [vmem:[%s2514 + $0x8] sm:$0xf]
    %v2518 = vld [vmem:[%s2514 + $0xc] sm:$0xf]
    %v2519 = vld [vmem:[%s2514 + $0x10] sm:$0xf]
    %v2520 = vld [vmem:[%s2514 + $0x14] sm:$0xf]
    %v2521 = vld [vmem:[%s2514 + $0x18] sm:$0xf]
    %v2522 = vld [vmem:[%s2514 + $0x1c] sm:$0xf]
    %v2523 = vld [vmem:[%s2514 + $0x20] sm:$0xf]
    %v2524 = vld [vmem:[%s2514 + $0x24] sm:$0xf]
    %v2525 = vld [vmem:[%s2514 + $0x28] sm:$0xf]
    %v2526 = vld [vmem:[%s2514 + $0x2c] sm:$0xf]
    %v2527 = vld [vmem:[%s2514 + $0x30] sm:$0xf]
    %v2528 = vld [vmem:[%s2514 + $0x34] sm:$0xf]
    %v2529 = vld [vmem:[%s2514 + $0x38] sm:$0xf]
    %v2530 = vld [vmem:[%s2514 + $0x3c] sm:$0xf]
    %v2531 = vlaneseq
    %v2532 = vshrl.u32 %v2531, 7
    %v2533 = vsub.s32 4, %v2532
    %v2534 = vrot.slane %v68, %v2533
    %v2551 = vunpack.c.l.b16 %v2515
    %v2552 = vunpack.c.l.b16 %v2516
    %v2553 = vunpack.c.l.b16 %v2517
    %v2554 = vunpack.c.l.b16 %v2518
    %v2555 = vunpack.c.l.b16 %v2519
    %v2556 = vunpack.c.l.b16 %v2520
    %v2557 = vunpack.c.l.b16 %v2521
    %v2558 = vunpack.c.l.b16 %v2522
    %v2559 = vunpack.c.l.b16 %v2523
    %v2560 = vunpack.c.l.b16 %v2524
    %v2561 = vunpack.c.l.b16 %v2525
    %v2562 = vunpack.c.l.b16 %v2526
    %v2563 = vunpack.c.l.b16 %v2527
    %v2564 = vunpack.c.l.b16 %v2528
    %v2565 = vunpack.c.l.b16 %v2529
    %v2566 = vunpack.c.l.b16 %v2530
    %v2567 = vpack.c.b16 %v2552, %v2551
    %v2568 = vpack.c.b16 %v2554, %v2553
    %v2569 = vpack.c.b16 %v2556, %v2555
    %v2570 = vpack.c.b16 %v2558, %v2557
    %v2571 = vpack.c.b16 %v2560, %v2559
    %v2572 = vpack.c.b16 %v2562, %v2561
    %v2573 = vpack.c.b16 %v2564, %v2563
    %v2574 = vpack.c.b16 %v2566, %v2565
    %2583 = vmatprep.subr.bf16.mxu0 0
    %2584 = vmatpush1.bf16.msra.mxu0 %v2574
    %2585 = vmatprep.subr.bf16.mxu0 0
    %2586 = vmatpush1.bf16.msra.mxu0 %v2573
    %2587 = vmatprep.subr.bf16.mxu0 0
    %2588 = vmatpush1.bf16.msra.mxu0 %v2572
    %2589 = vmatprep.subr.bf16.mxu0 0
    %2590 = vmatpush1.bf16.msra.mxu0 %v2571
    %2591 = vmatprep.subr.bf16.mxu0 0
    %2592 = vmatpush1.bf16.msra.mxu0 %v2570
    %2593 = vmatprep.subr.bf16.mxu0 0
    %2594 = vmatpush1.bf16.msra.mxu0 %v2569
    %2595 = vmatprep.subr.bf16.mxu0 0
    %2596 = vmatpush1.bf16.msra.mxu0 %v2568
    %2597 = vmatprep.subr.bf16.mxu0 0
    %2598 = vmatpush1.bf16.msra.mxu0 %v2567
    %2599 = vmatprep.subr.bf16.mxu0 0
    %2600 = vmatpush2.bf16.msra.mxu0 0
    %2601 = vmatprep.subr.bf16.mxu0 0
    %2602 = vmatpush2.bf16.msra.mxu0 0
    %2603 = vmatprep.subr.bf16.mxu0 0
    %2604 = vmatpush2.bf16.msra.mxu0 0
    %2605 = vmatprep.subr.bf16.mxu0 0
    %2606 = vmatpush2.bf16.msra.mxu0 0
    %2607 = vmatprep.subr.bf16.mxu0 0
    %2608 = vmatpush2.bf16.msra.mxu0 0
    %2609 = vmatprep.subr.bf16.mxu0 0
    %2610 = vmatpush2.bf16.msra.mxu0 0
    %2611 = vmatprep.subr.bf16.mxu0 0
    %2612 = vmatpush2.bf16.msra.mxu0 0
    %2613 = vmatprep.subr.bf16.mxu0 0
    %2614 = vmatpush2.bf16.msra.mxu0 0
    %2615 = vmatprep.mubr.bf16.mxu0 0
    %2616 = vmatmul.mubr.bf16.gmra.mxu0 %v2513
    %v2617 = vpop.f32.mrf.mxu0
    %v2618 = vadd.f32 %v2534, %v2617
    %v2619 = vpop.f32.mrf.mxu0
    %v2620 = vpop.f32.mrf.mxu0
    %v2621 = vadd.f32 %v2534, %v2620
    %v2622 = vpop.f32.mrf.mxu0
    %2623 = vdwg.mxu0
    %v2624 = vpack.c.bf16 %v2621, %v2618
    %v2626 = vunpack.c.l.b16 %v2624
    %v2627 = vunpack.c.h.b16 %v2624
    %v2628 = vpack.c.b16 %v2626, %v2626
    %v2629 = vpack.c.b16 %v2627, %v2627
    %2632 = vst [vmem:[%s5] sm:$0xf] %v2628
    %2633 = vst [vmem:[%s5 + $0x4] sm:$0xf] %v2629
    // Predicated region
    $region34: #{forward.1} parent=1 // pred_check
      _
    $region35: #{forward.1} parent=1 // pred_check_branch
      %2635 = sbr.rel (0) target = $region37
    $region36: #{forward.1} parent=1 // pred_region
      _
    $region37: #{forward.1} parent=1 // pred_fallthru
      _
    // Predicated region
    $region38: #{forward.1} parent=1 // pred_check
      _
    $region39: #{forward.1} parent=1 // pred_check_branch
      %2637 = sbr.rel (0) target = $region41
    $region40: #{forward.1} parent=1 // pred_region
      _
    $region41: #{forward.1} parent=1 // pred_fallthru
      _
    %2638 = vsyncpa [#allocation3], 1
    %2639 = vsyncpa [#allocation5], 1

</llo_original>
